<compile_context>
chip_gen: v6e
topology: v6e:2x2x1
jax: 0.10.0
libtpu: 0.0.40
codegen_flags: <defaults>
</compile_context>

<pallas_src>
import jax
import jax.numpy as jnp
from jax.experimental import pallas as pl
from jax.experimental.pallas import tpu as pltpu


def _round_up(n, m):
    return ((n + m - 1) // m) * m


def _mlp_kernel(x_ref, w1_ref, b1_ref, w2_ref, b2_ref, w3_ref, b3_ref, o_ref):
    # Cast the streamed f32 activations to bf16 in-kernel (no wrapper HBM pass).
    x = x_ref[...].astype(jnp.bfloat16)
    # Layer 1: Linear + ReLU  (bf16 operands, f32 MXU accumulate, f32 elementwise)
    h1 = jnp.dot(x, w1_ref[...], preferred_element_type=jnp.float32)
    h1 = jnp.maximum(h1 + b1_ref[...], 0.0)
    # TODO(synk): nn.Dropout is identity at p=0 / eval; training-mode dropout masks not implemented.
    # Layer 2: Linear + ReLU
    h2 = jnp.dot(h1.astype(jnp.bfloat16), w2_ref[...],
                 preferred_element_type=jnp.float32)
    h2 = jnp.maximum(h2 + b2_ref[...], 0.0)
    # Output layer: Linear (no activation)
    out = jnp.dot(h2.astype(jnp.bfloat16), w3_ref[...],
                  preferred_element_type=jnp.float32)
    o_ref[...] = (out + b3_ref[...]).astype(o_ref.dtype)


def prepare_params(params):
    """One-time cast of weights to bf16 (biases stay f32). Call once and reuse."""
    return {
        "w1": params["w1"].astype(jnp.bfloat16), "b1": params["b1"],
        "w2": params["w2"].astype(jnp.bfloat16), "b2": params["b2"],
        "w3": params["w3"].astype(jnp.bfloat16), "b3": params["b3"],
    }


def _pick_tile(B, tile_b):
    """Batch tile: multiple of 8, capped at tile_b; split into >=2 parallel steps
    when the whole batch would otherwise be one tile (keeps v7x's 2nd core busy)."""
    tb = min(tile_b, _round_up(B, 8))
    if pl.cdiv(B, tb) == 1 and B > 8:
        tb = _round_up(pl.cdiv(B, 2), 8)
    return tb


def mlp_forward(x, prepared, *, tile_b=4096):
    """x: (B, input_features) float32.
    prepared: dict from prepare_params() — bf16 (in,out) weights, f32 (1,out) biases."""
    B, in_f = x.shape
    w1, w2, w3 = prepared["w1"], prepared["w2"], prepared["w3"]
    b1, b2, b3 = prepared["b1"], prepared["b2"], prepared["b3"]
    h1_f, h2_f, out_f = w1.shape[1], w2.shape[1], w3.shape[1]

    tb = _pick_tile(B, tile_b)
    grid = (pl.cdiv(B, tb),)   # ragged last block handled by masked edge stores

    # Weights / biases: full-array blocks, constant index_map -> VMEM-resident across steps.
    def resident(a):
        return pl.BlockSpec(a.shape, lambda i: (0,) * a.ndim)

    flops = 2 * B * (in_f * h1_f + h1_f * h2_f + h2_f * out_f)
    weight_bytes = (w1.size + w2.size + w3.size) * 2 + (b1.size + b2.size + b3.size) * 4
    bytes_accessed = B * in_f * 4 + B * out_f * 4 + weight_bytes
    cost = pl.CostEstimate(flops=flops, transcendentals=0,
                           bytes_accessed=bytes_accessed)

    return pl.pallas_call(
        _mlp_kernel,
        out_shape=jax.ShapeDtypeStruct((B, out_f), jnp.float32),
        grid=grid,
        in_specs=[
            pl.BlockSpec((tb, in_f), lambda i: (i, 0)),   # x: streamed f32 per batch tile
            resident(w1), resident(b1),
            resident(w2), resident(b2),
            resident(w3), resident(b3),
        ],
        out_specs=pl.BlockSpec((tb, out_f), lambda i: (i, 0)),
        compiler_params=pltpu.CompilerParams(
            dimension_semantics=("parallel",)),
        cost_estimate=cost,
    )(x, w1, b1, w2, b2, w3, b3)


def init_params(key, input_features, hidden_neurons, out_features):
    """Deterministic init mirroring nn.Linear's default (uniform +-1/sqrt(fan_in))."""
    sizes = [input_features] + list(hidden_neurons) + [out_features]
    params = {}
    for i, (fan_in, fan_out) in enumerate(zip(sizes[:-1], sizes[1:]), start=1):
        key, kw, kb = jax.random.split(key, 3)
        bound = 1.0 / jnp.sqrt(fan_in)
        # Stored as (in, out): transpose of PyTorch's (out, in) weight.
        params[f"w{i}"] = jax.random.uniform(
            kw, (fan_in, fan_out), jnp.float32, minval=-bound, maxval=bound)
        params[f"b{i}"] = jax.random.uniform(
            kb, (1, fan_out), jnp.float32, minval=-bound, maxval=bound)
    return params


def reference_forward_f32(x, params):
    """Pure f32 reference (semantics of the PyTorch module)."""
    h1 = jnp.maximum(x @ params["w1"] + params["b1"], 0.0)
    h2 = jnp.maximum(h1 @ params["w2"] + params["b2"], 0.0)
    return h2 @ params["w3"] + params["b3"]


def reference_forward_bf16(x, params):
    """Reference with the same bf16 operand rounding / f32 accumulation as the kernel."""
    bf = jnp.bfloat16
    h1 = jnp.dot(x.astype(bf), params["w1"].astype(bf),
                 preferred_element_type=jnp.float32) + params["b1"]
    h1 = jnp.maximum(h1, 0.0)
    h2 = jnp.dot(h1.astype(bf), params["w2"].astype(bf),
                 preferred_element_type=jnp.float32) + params["b2"]
    h2 = jnp.maximum(h2, 0.0)
    out = jnp.dot(h2.astype(bf), params["w3"].astype(bf),
                  preferred_element_type=jnp.float32) + params["b3"]
    return out


if __name__ == "__main__":
    input_features = 32
    hidden_neurons = [64, 32]
    out_features = 8
    # Batch chosen so the tile-split heuristic gives a 2-step grid with a ragged last
    # block (1000 rows -> tb=504, grid=(2,)), exercising the masked edge-store path.
    batch = 1000

    key = jax.random.PRNGKey(0)
    key, kx = jax.random.split(key)
    x = jax.random.normal(kx, (batch, input_features), jnp.float32)
    params = init_params(key, input_features, hidden_neurons, out_features)
    prepared = prepare_params(params)   # bf16 weight cast happens exactly once

    out = mlp_forward(x, prepared)
    out = jax.block_until_ready(out)

    assert out.shape == (batch, out_features)
    # Tight check vs a reference with identical bf16 rounding / f32 accumulation.
    ref_bf16 = reference_forward_bf16(x, params)
    assert jnp.allclose(out, ref_bf16, atol=1e-3, rtol=1e-3), "mismatch vs bf16-matched reference"
    # Looser check vs the pure-f32 PyTorch-equivalent semantics (bf16 operand rounding only).
    ref_f32 = reference_forward_f32(x, params)
    assert jnp.allclose(out, ref_f32, atol=5e-2, rtol=5e-2), "mismatch vs f32 reference"

    print("KERNEL_OK")
</pallas_src>

<mosaic_0001>
module attributes {stable_mosaic.version = 11 : i64} {
  func.func @_mlp_kernel(%arg0: i32, %arg1: memref<504x32xf32, #tpu.memory_space<vmem>>, %arg2: memref<32x64xbf16, #tpu.memory_space<vmem>>, %arg3: memref<1x64xf32, #tpu.memory_space<vmem>>, %arg4: memref<64x32xbf16, #tpu.memory_space<vmem>>, %arg5: memref<1x32xf32, #tpu.memory_space<vmem>>, %arg6: memref<32x8xbf16, #tpu.memory_space<vmem>>, %arg7: memref<1x8xf32, #tpu.memory_space<vmem>>, %arg8: memref<504x8xf32, #tpu.memory_space<vmem>>) attributes {dimension_semantics = [#tpu.dimension_semantics<parallel>], iteration_bounds = array<i64: 2>, scalar_prefetch = 0 : i64, scratch_operands = 0 : i64, tpu.core_type = #tpu.core_type<tc>, window_params = [{transform_indices = @transform_0, window_bounds = array<i64: 504, 32>}, {pipeline_mode = #tpu.pipeline_mode<synchronous>, transform_indices = @transform_1, window_bounds = array<i64: 32, 64>}, {pipeline_mode = #tpu.pipeline_mode<synchronous>, transform_indices = @transform_2, window_bounds = array<i64: 1, 64>}, {pipeline_mode = #tpu.pipeline_mode<synchronous>, transform_indices = @transform_3, window_bounds = array<i64: 64, 32>}, {pipeline_mode = #tpu.pipeline_mode<synchronous>, transform_indices = @transform_4, window_bounds = array<i64: 1, 32>}, {pipeline_mode = #tpu.pipeline_mode<synchronous>, transform_indices = @transform_5, window_bounds = array<i64: 32, 8>}, {pipeline_mode = #tpu.pipeline_mode<synchronous>, transform_indices = @transform_6, window_bounds = array<i64: 1, 8>}, {transform_indices = @transform_7, window_bounds = array<i64: 504, 8>}]} {
    %c0 = arith.constant 0 : index
    %c0_0 = arith.constant 0 : index
    %0 = vector.load %arg1[%c0, %c0_0] : memref<504x32xf32, #tpu.memory_space<vmem>>, vector<504x32xf32>
    %1 = arith.truncf %0 : vector<504x32xf32> to vector<504x32xbf16>
    %c0_1 = arith.constant 0 : index
    %c0_2 = arith.constant 0 : index
    %2 = vector.load %arg2[%c0_1, %c0_2] : memref<32x64xbf16, #tpu.memory_space<vmem>>, vector<32x64xbf16>
    %cst = arith.constant dense<0.000000e+00> : vector<504x64xf32>
    %3 = tpu.matmul %1, %2, %cst {dimension_numbers = #tpu.dot_dimension_numbers<[1], [0], [0], [1], [0, 0, 1, 1], [], []>} : vector<504x32xbf16>, vector<32x64xbf16>, vector<504x64xf32> -> vector<504x64xf32>
    %c0_3 = arith.constant 0 : index
    %c0_4 = arith.constant 0 : index
    %4 = vector.load %arg3[%c0_3, %c0_4] : memref<1x64xf32, #tpu.memory_space<vmem>>, vector<1x64xf32>
    %5 = vector.broadcast %4 : vector<1x64xf32> to vector<504x64xf32>
    %6 = arith.addf %3, %5 : vector<504x64xf32>
    %cst_5 = arith.constant 0.000000e+00 : f32
    %7 = vector.broadcast %cst_5 : f32 to vector<504x64xf32>
    %8 = arith.maximumf %6, %7 : vector<504x64xf32>
    %9 = arith.truncf %8 : vector<504x64xf32> to vector<504x64xbf16>
    %c0_6 = arith.constant 0 : index
    %c0_7 = arith.constant 0 : index
    %10 = vector.load %arg4[%c0_6, %c0_7] : memref<64x32xbf16, #tpu.memory_space<vmem>>, vector<64x32xbf16>
    %cst_8 = arith.constant dense<0.000000e+00> : vector<504x32xf32>
    %11 = tpu.matmul %9, %10, %cst_8 {dimension_numbers = #tpu.dot_dimension_numbers<[1], [0], [0], [1], [0, 0, 1, 1], [], []>} : vector<504x64xbf16>, vector<64x32xbf16>, vector<504x32xf32> -> vector<504x32xf32>
    %c0_9 = arith.constant 0 : index
    %c0_10 = arith.constant 0 : index
    %12 = vector.load %arg5[%c0_9, %c0_10] : memref<1x32xf32, #tpu.memory_space<vmem>>, vector<1x32xf32>
    %13 = vector.broadcast %12 : vector<1x32xf32> to vector<504x32xf32>
    %14 = arith.addf %11, %13 : vector<504x32xf32>
    %cst_11 = arith.constant 0.000000e+00 : f32
    %15 = vector.broadcast %cst_11 : f32 to vector<504x32xf32>
    %16 = arith.maximumf %14, %15 : vector<504x32xf32>
    %17 = arith.truncf %16 : vector<504x32xf32> to vector<504x32xbf16>
    %c0_12 = arith.constant 0 : index
    %c0_13 = arith.constant 0 : index
    %18 = vector.load %arg6[%c0_12, %c0_13] : memref<32x8xbf16, #tpu.memory_space<vmem>>, vector<32x8xbf16>
    %cst_14 = arith.constant dense<0.000000e+00> : vector<504x8xf32>
    %19 = tpu.matmul %17, %18, %cst_14 {dimension_numbers = #tpu.dot_dimension_numbers<[1], [0], [0], [1], [0, 0, 1, 1], [], []>} : vector<504x32xbf16>, vector<32x8xbf16>, vector<504x8xf32> -> vector<504x8xf32>
    %c0_15 = arith.constant 0 : index
    %c0_16 = arith.constant 0 : index
    %20 = vector.load %arg7[%c0_15, %c0_16] : memref<1x8xf32, #tpu.memory_space<vmem>>, vector<1x8xf32>
    %21 = vector.broadcast %20 : vector<1x8xf32> to vector<504x8xf32>
    %22 = arith.addf %19, %21 : vector<504x8xf32>
    %c0_17 = arith.constant 0 : index
    %c0_18 = arith.constant 0 : index
    %23 = vector.load %arg8[%c0_17, %c0_18] : memref<504x8xf32, #tpu.memory_space<vmem>>, vector<504x8xf32>
    tpu.vector_store %arg8[%c0_17, %c0_18], %22 {strides = array<i32>} : memref<504x8xf32, #tpu.memory_space<vmem>>, vector<504x8xf32>,
    return
  }
  func.func @transform_0(%arg0: i32) -> (i32, i32) {
    %c0_i32 = arith.constant 0 : i32
    %c0_i32_0 = arith.constant 0 : i32
    return %arg0, %c0_i32 : i32, i32
  }
  func.func @transform_1(%arg0: i32) -> (i32, i32) {
    %c0_i32 = arith.constant 0 : i32
    %c0_i32_0 = arith.constant 0 : i32
    %c0_i32_1 = arith.constant 0 : i32
    return %c0_i32, %c0_i32_0 : i32, i32
  }
  func.func @transform_2(%arg0: i32) -> (i32, i32) {
    %c0_i32 = arith.constant 0 : i32
    %c0_i32_0 = arith.constant 0 : i32
    %c0_i32_1 = arith.constant 0 : i32
    return %c0_i32, %c0_i32_0 : i32, i32
  }
  func.func @transform_3(%arg0: i32) -> (i32, i32) {
    %c0_i32 = arith.constant 0 : i32
    %c0_i32_0 = arith.constant 0 : i32
    %c0_i32_1 = arith.constant 0 : i32
    return %c0_i32, %c0_i32_0 : i32, i32
  }
  func.func @transform_4(%arg0: i32) -> (i32, i32) {
    %c0_i32 = arith.constant 0 : i32
    %c0_i32_0 = arith.constant 0 : i32
    %c0_i32_1 = arith.constant 0 : i32
    return %c0_i32, %c0_i32_0 : i32, i32
  }
  func.func @transform_5(%arg0: i32) -> (i32, i32) {
    %c0_i32 = arith.constant 0 : i32
    %c0_i32_0 = arith.constant 0 : i32
    %c0_i32_1 = arith.constant 0 : i32
    return %c0_i32, %c0_i32_0 : i32, i32
  }
  func.func @transform_6(%arg0: i32) -> (i32, i32) {
    %c0_i32 = arith.constant 0 : i32
    %c0_i32_0 = arith.constant 0 : i32
    %c0_i32_1 = arith.constant 0 : i32
    return %c0_i32, %c0_i32_0 : i32, i32
  }
  func.func @transform_7(%arg0: i32) -> (i32, i32) {
    %c0_i32 = arith.constant 0 : i32
    %c0_i32_0 = arith.constant 0 : i32
    return %arg0, %c0_i32 : i32, i32
  }
}

</mosaic_0001>

<llo_original>
// kernel: tpu_custom_call.1
$region0: #{tpu_custom_call.1}
  #allocation0 [shape = 'u32[]', space=smem, size = 0x4, offset = 0x4, fixed_abs, tag = 'smem constant byte address 0x4 - core index']
  #allocation1 [shape = 'u32[144,128]{1,0:T(1,128)}', space=vmem, size = 0x12000, scoped, tag = 'internal scratch']
  %s0 = inlined_call_operand.vmem [shape: f32[1000,32], index: 0, kind: input, shape index: {}]
  %s1 = inlined_call_operand.vmem [shape: bf16[32,64], index: 1, kind: input, shape index: {}]
  %s2 = inlined_call_operand.vmem [shape: f32[1,64], index: 2, kind: input, shape index: {}]
  %s3 = inlined_call_operand.vmem [shape: bf16[64,32], index: 3, kind: input, shape index: {}]
  %s4 = inlined_call_operand.vmem [shape: f32[1,32], index: 4, kind: input, shape index: {}]
  %s5 = inlined_call_operand.vmem [shape: bf16[32,8], index: 5, kind: input, shape index: {}]
  %s6 = inlined_call_operand.vmem [shape: f32[1,8], index: 6, kind: input, shape index: {}]
  %s7 = inlined_call_operand.vmem [shape: f32[1000,8], index: 7, kind: output, shape index: {}]
  %s8 = sld [smem:[#allocation0]]
  $region109: #{tpu_custom_call.1} parent=0
    _
  %s10 = ssub.s32 1, %s8
  %s11 = scalar_select 0, %s10, %s8
  $region1: #{tpu_custom_call.1} parent=0
    #allocation2 [shape = 'u8[516096]{0}', space=vmem, size = 0x7e000, scoped, tag = 'output window, operand 0']
    loop: start=0, step=1, limit=4
    $region2: #{tpu_custom_call.1} parent=1 // loop_pre_header
      _
    $region3: #{tpu_custom_call.1} parent=1 // loop_header
      %s13 = sphi 0, %s17
      %p14 = scmp.ge.s32.totalorder %s13, 4
      %s23 = sphi 0, %s25
      %s26 = sphi 0, %s23
      %s27 = sphi 0, %s26
      %s43 = sphi 0, %s27
      %s47 = sphi 0, %s47
      %s49 = sphi 0, %s47
      %s50 = sphi 0, %s49
      %s64 = sphi 0, %s50
      %s68 = sphi 0, %s68
      %s70 = sphi 0, %s68
      %s71 = sphi 0, %s70
      %s85 = sphi 0, %s71
      %s89 = sphi 0, %s89
      %s91 = sphi 0, %s89
      %s92 = sphi 0, %s91
      %s106 = sphi 0, %s92
      %s110 = sphi 0, %s110
      %s112 = sphi 0, %s110
      %s113 = sphi 0, %s112
      %s127 = sphi 0, %s113
      %s131 = sphi 0, %s131
      %s133 = sphi 0, %s131
      %s134 = sphi 0, %s133
      %s148 = sphi 0, %s134
      %s152 = sphi 0, %s152
      %s154 = sphi 0, %s152
      %s155 = sphi 0, %s154
      %s169 = sphi 0, %s155
      %s175 = sphi 0, %s177
      %s178 = sphi 0, %s175
      %s179 = sphi 0, %s178
      %s195 = sphi 0, %s179
    $region4: #{tpu_custom_call.1} parent=1 // loop_header_branch
      %16 = sbr.rel (%p14) target = $region8
    $region5: #{tpu_custom_call.1} parent=1 // loop_body
      %s18 = ssub.s32 %s13, 1
      %s19 = ssub.s32 %s13, 2
      %s20 = sadd.s32 %s13, 1
      %s21 = ssub.s32 %s13, %s20
      %p22 = scmp.eq.s32.totalorder %s21, 0
      %s24 = sadd.s32 %s23, 1
      %s25 = scalar_select %p22, %s23, %s24
      %p28 = pneg %p22
      %p29 = scmp.eq.s32.totalorder %s13, 1
      %p30 = por %p28, %p29
      %p31 = scmp.ne.s32.totalorder %s23, %s26
      %p32 = scmp.eq.s32.totalorder %s13, 0
      %p33 = por %p31, %p32
      %p34 = scmp.ne.s32.totalorder %s23, %s26
      %p35 = scmp.eq.s32.totalorder %s18, 1
      %p36 = por %p34, %p35
      %p37 = scmp.ne.s32.totalorder %s26, %s27
      %p38 = scmp.eq.s32.totalorder %s18, 0
      %p39 = por %p37, %p38
      %p40 = scmp.ne.s32.totalorder %s26, %s27
      %p41 = scmp.eq.s32.totalorder %s19, 1
      %p42 = por %p40, %p41
      %p44 = scmp.ne.s32.totalorder %s27, %s43
      %p45 = scmp.eq.s32.totalorder %s19, 0
      %p46 = por %p44, %p45
      %s48 = sadd.s32 %s47, 1
      %p51 = scmp.eq.s32.totalorder %s13, 1
      %p52 = scmp.ne.s32.totalorder %s47, %s49
      %p53 = scmp.eq.s32.totalorder %s13, 0
      %p54 = por %p52, %p53
      %p55 = scmp.ne.s32.totalorder %s47, %s49
      %p56 = scmp.eq.s32.totalorder %s18, 1
      %p57 = por %p55, %p56
      %p58 = scmp.ne.s32.totalorder %s49, %s50
      %p59 = scmp.eq.s32.totalorder %s18, 0
      %p60 = por %p58, %p59
      %p61 = scmp.ne.s32.totalorder %s49, %s50
      %p62 = scmp.eq.s32.totalorder %s19, 1
      %p63 = por %p61, %p62
      %p65 = scmp.ne.s32.totalorder %s50, %s64
      %p66 = scmp.eq.s32.totalorder %s19, 0
      %p67 = por %p65, %p66
      %s69 = sadd.s32 %s68, 1
      %p72 = scmp.eq.s32.totalorder %s13, 1
      %p73 = scmp.ne.s32.totalorder %s68, %s70
      %p74 = scmp.eq.s32.totalorder %s13, 0
      %p75 = por %p73, %p74
      %p76 = scmp.ne.s32.totalorder %s68, %s70
      %p77 = scmp.eq.s32.totalorder %s18, 1
      %p78 = por %p76, %p77
      %p79 = scmp.ne.s32.totalorder %s70, %s71
      %p80 = scmp.eq.s32.totalorder %s18, 0
      %p81 = por %p79, %p80
      %p82 = scmp.ne.s32.totalorder %s70, %s71
      %p83 = scmp.eq.s32.totalorder %s19, 1
      %p84 = por %p82, %p83
      %p86 = scmp.ne.s32.totalorder %s71, %s85
      %p87 = scmp.eq.s32.totalorder %s19, 0
      %p88 = por %p86, %p87
      %s90 = sadd.s32 %s89, 1
      %p93 = scmp.eq.s32.totalorder %s13, 1
      %p94 = scmp.ne.s32.totalorder %s89, %s91
      %p95 = scmp.eq.s32.totalorder %s13, 0
      %p96 = por %p94, %p95
      %p97 = scmp.ne.s32.totalorder %s89, %s91
      %p98 = scmp.eq.s32.totalorder %s18, 1
      %p99 = por %p97, %p98
      %p100 = scmp.ne.s32.totalorder %s91, %s92
      %p101 = scmp.eq.s32.totalorder %s18, 0
      %p102 = por %p100, %p101
      %p103 = scmp.ne.s32.totalorder %s91, %s92
      %p104 = scmp.eq.s32.totalorder %s19, 1
      %p105 = por %p103, %p104
      %p107 = scmp.ne.s32.totalorder %s92, %s106
      %p108 = scmp.eq.s32.totalorder %s19, 0
      %p109 = por %p107, %p108
      %s111 = sadd.s32 %s110, 1
      %p114 = scmp.eq.s32.totalorder %s13, 1
      %p115 = scmp.ne.s32.totalorder %s110, %s112
      %p116 = scmp.eq.s32.totalorder %s13, 0
      %p117 = por %p115, %p116
      %p118 = scmp.ne.s32.totalorder %s110, %s112
      %p119 = scmp.eq.s32.totalorder %s18, 1
      %p120 = por %p118, %p119
      %p121 = scmp.ne.s32.totalorder %s112, %s113
      %p122 = scmp.eq.s32.totalorder %s18, 0
      %p123 = por %p121, %p122
      %p124 = scmp.ne.s32.totalorder %s112, %s113
      %p125 = scmp.eq.s32.totalorder %s19, 1
      %p126 = por %p124, %p125
      %p128 = scmp.ne.s32.totalorder %s113, %s127
      %p129 = scmp.eq.s32.totalorder %s19, 0
      %p130 = por %p128, %p129
      %s132 = sadd.s32 %s131, 1
      %p135 = scmp.eq.s32.totalorder %s13, 1
      %p136 = scmp.ne.s32.totalorder %s131, %s133
      %p137 = scmp.eq.s32.totalorder %s13, 0
      %p138 = por %p136, %p137
      %p139 = scmp.ne.s32.totalorder %s131, %s133
      %p140 = scmp.eq.s32.totalorder %s18, 1
      %p141 = por %p139, %p140
      %p142 = scmp.ne.s32.totalorder %s133, %s134
      %p143 = scmp.eq.s32.totalorder %s18, 0
      %p144 = por %p142, %p143
      %p145 = scmp.ne.s32.totalorder %s133, %s134
      %p146 = scmp.eq.s32.totalorder %s19, 1
      %p147 = por %p145, %p146
      %p149 = scmp.ne.s32.totalorder %s134, %s148
      %p150 = scmp.eq.s32.totalorder %s19, 0
      %p151 = por %p149, %p150
      %s153 = sadd.s32 %s152, 1
      %p156 = scmp.eq.s32.totalorder %s13, 1
      %p157 = scmp.ne.s32.totalorder %s152, %s154
      %p158 = scmp.eq.s32.totalorder %s13, 0
      %p159 = por %p157, %p158
      %p160 = scmp.ne.s32.totalorder %s152, %s154
      %p161 = scmp.eq.s32.totalorder %s18, 1
      %p162 = por %p160, %p161
      %p163 = scmp.ne.s32.totalorder %s154, %s155
      %p164 = scmp.eq.s32.totalorder %s18, 0
      %p165 = por %p163, %p164
      %p166 = scmp.ne.s32.totalorder %s154, %s155
      %p167 = scmp.eq.s32.totalorder %s19, 1
      %p168 = por %p166, %p167
      %p170 = scmp.ne.s32.totalorder %s155, %s169
      %p171 = scmp.eq.s32.totalorder %s19, 0
      %p172 = por %p170, %p171
      %s173 = ssub.s32 %s13, %s20
      %p174 = scmp.eq.s32.totalorder %s173, 0
      %s176 = sadd.s32 %s175, 1
      %s177 = scalar_select %p174, %s175, %s176
      %p180 = pneg %p174
      %p181 = scmp.eq.s32.totalorder %s13, 1
      %p182 = por %p180, %p181
      %p183 = scmp.ne.s32.totalorder %s175, %s178
      %p184 = scmp.eq.s32.totalorder %s13, 0
      %p185 = por %p183, %p184
      %p186 = scmp.ne.s32.totalorder %s175, %s178
      %p187 = scmp.eq.s32.totalorder %s18, 1
      %p188 = por %p186, %p187
      %p189 = scmp.ne.s32.totalorder %s178, %s179
      %p190 = scmp.eq.s32.totalorder %s18, 0
      %p191 = por %p189, %p190
      %p192 = scmp.ne.s32.totalorder %s178, %s179
      %p193 = scmp.eq.s32.totalorder %s19, 1
      %p194 = por %p192, %p193
      %p196 = scmp.ne.s32.totalorder %s179, %s195
      %p197 = scmp.eq.s32.totalorder %s19, 0
      %p198 = por %p196, %p197
      %p199 = scmp.le.s32.totalorder 1, %s13
      %p200 = scmp.lt.s32.totalorder %s13, 3
      %p201 = pnand %p199, %p200
      %p202 = pneg %p201
      // Predicated region
      $region9: #{tpu_custom_call.1} parent=5 // pred_check
        _
      $region10: #{tpu_custom_call.1} parent=5 // pred_check_branch
        %204 = sbr.rel (%p201) target = $region12
      $region11: #{tpu_custom_call.1} parent=5 // pred_region
        %s205 = ssub.s32 %s13, 1
        // Predicated region
        $region13: #{tpu_custom_call.1} parent=11 // pred_check
          %p206 = pneg %p60
        $region14: #{tpu_custom_call.1} parent=11 // pred_check_branch
          %208 = sbr.rel (%p206) target = $region16
        $region15: #{tpu_custom_call.1} parent=11 // pred_region
          _
        $region16: #{tpu_custom_call.1} parent=11 // pred_fallthru
          _
        // Predicated region
        $region17: #{tpu_custom_call.1} parent=11 // pred_check
          %p209 = pneg %p81
        $region18: #{tpu_custom_call.1} parent=11 // pred_check_branch
          %211 = sbr.rel (%p209) target = $region20
        $region19: #{tpu_custom_call.1} parent=11 // pred_region
          _
        $region20: #{tpu_custom_call.1} parent=11 // pred_fallthru
          _
        // Predicated region
        $region21: #{tpu_custom_call.1} parent=11 // pred_check
          %p212 = pneg %p102
        $region22: #{tpu_custom_call.1} parent=11 // pred_check_branch
          %214 = sbr.rel (%p212) target = $region24
        $region23: #{tpu_custom_call.1} parent=11 // pred_region
          _
        $region24: #{tpu_custom_call.1} parent=11 // pred_fallthru
          _
        // Predicated region
        $region25: #{tpu_custom_call.1} parent=11 // pred_check
          %p215 = pneg %p123
        $region26: #{tpu_custom_call.1} parent=11 // pred_check_branch
          %217 = sbr.rel (%p215) target = $region28
        $region27: #{tpu_custom_call.1} parent=11 // pred_region
          _
        $region28: #{tpu_custom_call.1} parent=11 // pred_fallthru
          _
        // Predicated region
        $region29: #{tpu_custom_call.1} parent=11 // pred_check
          %p218 = pneg %p144
        $region30: #{tpu_custom_call.1} parent=11 // pred_check_branch
          %220 = sbr.rel (%p218) target = $region32
        $region31: #{tpu_custom_call.1} parent=11 // pred_region
          _
        $region32: #{tpu_custom_call.1} parent=11 // pred_fallthru
          _
        // Predicated region
        $region33: #{tpu_custom_call.1} parent=11 // pred_check
          %p221 = pneg %p165
        $region34: #{tpu_custom_call.1} parent=11 // pred_check_branch
          %223 = sbr.rel (%p221) target = $region36
        $region35: #{tpu_custom_call.1} parent=11 // pred_region
          _
        $region36: #{tpu_custom_call.1} parent=11 // pred_fallthru
          _
      $region12: #{tpu_custom_call.1} parent=5 // pred_fallthru
        _
      %p224 = scmp.lt.s32.totalorder %s13, 2
      // Predicated region
      $region37: #{tpu_custom_call.1} parent=5 // pred_check
        %p225 = pneg %p224
      $region38: #{tpu_custom_call.1} parent=5 // pred_check_branch
        %227 = sbr.rel (%p225) target = $region40
      $region39: #{tpu_custom_call.1} parent=5 // pred_region
        // Predicated region
        $region41: #{tpu_custom_call.1} parent=39 // pred_check
          %p228 = pneg %p33
        $region42: #{tpu_custom_call.1} parent=39 // pred_check_branch
          %230 = sbr.rel (%p228) target = $region44
        $region43: #{tpu_custom_call.1} parent=39 // pred_region
          %s231 = smul.u32 63, %s13
          %s232 = ssub.s32 125, %s231
          %p233 = scmp.lt.s32.totalorder %s232, 63
          %s234 = scalar_select %p233, %s232, 63
          %s235 = smul.u32 128, %s234
          %p236 = scmp.lt.s32.totalorder %s231, 124
          %s237 = scalar_select %p236, %s231, 124
          %s238 = smul.addr %s237, 8
          %s239 = scalar_lea.vmem %s0, %s238
          %s240 = smul.u32 63, %s13
          %s241 = ssub.s32 125, %s240
          %p242 = scmp.lt.s32.totalorder %s241, 63
          %s243 = scalar_select %p242, %s241, 63
          %s244 = smul.u32 128, %s243
        $region44: #{tpu_custom_call.1} parent=39 // pred_fallthru
          _
      $region40: #{tpu_custom_call.1} parent=5 // pred_fallthru
        _
      %p245 = scmp.le.s32.totalorder 1, %s13
      %p246 = scmp.lt.s32.totalorder %s13, 3
      %p247 = pnand %p245, %p246
      %p248 = pneg %p247
      // Predicated region
      $region45: #{tpu_custom_call.1} parent=5 // pred_check
        _
      $region46: #{tpu_custom_call.1} parent=5 // pred_check_branch
        %250 = sbr.rel (%p247) target = $region48
      $region47: #{tpu_custom_call.1} parent=5 // pred_region
        %s251 = ssub.s32 %s13, 1
        %s252 = smul.u32 63, %s18
        %s253 = ssub.s32 125, %s252
        %p254 = scmp.lt.s32.totalorder %s253, 63
        %s255 = scalar_select %p254, %s253, 63
        %s256 = smul.u32 128, %s255
        %p257 = scmp.lt.s32.totalorder %s252, 124
        %s258 = scalar_select %p257, %s252, 124
        %s259 = smul.addr %s258, 8
        %s260 = scalar_lea.vmem %s0, %s259
        %p261 = pneg %p39
        %p262 = pneg %p36
        %p263 = pneg %p60
        %p264 = pneg %p57
        %p265 = pneg %p81
        %p266 = pneg %p78
        %p267 = pneg %p102
        %p268 = pneg %p99
        %p269 = pneg %p123
        %p270 = pneg %p120
        %p271 = pneg %p144
        %p272 = pneg %p141
        %p273 = pneg %p165
        %p274 = pneg %p162
        %p275 = pneg %p191
        %p276 = pneg %p188
        %s277 = sand.u32 %s178, 1
        %s278 = sand.u32 %s178, 1
        %s279 = smul.addr %s278, 504
        %s280 = scalar_lea.vmem [#allocation2], %s279
        %s281 = smul.u32 63, %s18
        %s282 = ssub.s32 125, %s281
        %p283 = scmp.lt.s32.totalorder %s282, 63
        %s284 = scalar_select %p283, %s282, 63
        %s285 = smul.u32 128, %s284
        %p286 = scmp.lt.s32.totalorder %s281, 124
        %s287 = scalar_select %p286, %s281, 124
        %s288 = smul.addr %s287, 8
        %s289 = scalar_lea.vmem %s0, %s288
        %s290 = smul.u32 63, %s18
        %s291 = ssub.s32 125, %s290
        %p292 = scmp.lt.s32.totalorder %s291, 63
        %s293 = scalar_select %p292, %s291, 63
        %s294 = smul.u32 128, %s293
        %s295 = smul.u32 63, %s18
        %s296 = ssub.s32 125, %s295
        %p297 = scmp.lt.s32.totalorder %s296, 63
        %s298 = scalar_select %p297, %s296, 63
        %s299 = smul.u32 128, %s298
        %v301 = vld [vmem:[%s289] sm:$0xff]
        %v302 = vld [vmem:[%s289 + $0x8] sm:$0xff]
        %v303 = vld [vmem:[%s289 + $0x10] sm:$0xff]
        %v304 = vld [vmem:[%s289 + $0x18] sm:$0xff]
        %v305 = vld [vmem:[%s289 + $0x20] sm:$0xff]
        %v306 = vld [vmem:[%s289 + $0x28] sm:$0xff]
        %v307 = vld [vmem:[%s289 + $0x30] sm:$0xff]
        %v308 = vld [vmem:[%s289 + $0x38] sm:$0xff]
        %v309 = vld [vmem:[%s289 + $0x40] sm:$0xff]
        %v310 = vld [vmem:[%s289 + $0x48] sm:$0xff]
        %v311 = vld [vmem:[%s289 + $0x50] sm:$0xff]
        %v312 = vld [vmem:[%s289 + $0x58] sm:$0xff]
        %v313 = vld [vmem:[%s289 + $0x60] sm:$0xff]
        %v314 = vld [vmem:[%s289 + $0x68] sm:$0xff]
        %v315 = vld [vmem:[%s289 + $0x70] sm:$0xff]
        %v316 = vld [vmem:[%s289 + $0x78] sm:$0xff]
        %v317 = vld [vmem:[%s289 + $0x80] sm:$0xff]
        %v318 = vld [vmem:[%s289 + $0x88] sm:$0xff]
        %v319 = vld [vmem:[%s289 + $0x90] sm:$0xff]
        %v320 = vld [vmem:[%s289 + $0x98] sm:$0xff]
        %v321 = vld [vmem:[%s289 + $0xa0] sm:$0xff]
        %v322 = vld [vmem:[%s289 + $0xa8] sm:$0xff]
        %v323 = vld [vmem:[%s289 + $0xb0] sm:$0xff]
        %v324 = vld [vmem:[%s289 + $0xb8] sm:$0xff]
        %v325 = vld [vmem:[%s289 + $0xc0] sm:$0xff]
        %v326 = vld [vmem:[%s289 + $0xc8] sm:$0xff]
        %v327 = vld [vmem:[%s289 + $0xd0] sm:$0xff]
        %v328 = vld [vmem:[%s289 + $0xd8] sm:$0xff]
        %v329 = vld [vmem:[%s289 + $0xe0] sm:$0xff]
        %v330 = vld [vmem:[%s289 + $0xe8] sm:$0xff]
        %v331 = vld [vmem:[%s289 + $0xf0] sm:$0xff]
        %v332 = vld [vmem:[%s289 + $0xf8] sm:$0xff]
        %v333 = vld [vmem:[%s289 + $0x100] sm:$0xff]
        %v334 = vld [vmem:[%s289 + $0x108] sm:$0xff]
        %v335 = vld [vmem:[%s289 + $0x110] sm:$0xff]
        %v336 = vld [vmem:[%s289 + $0x118] sm:$0xff]
        %v337 = vld [vmem:[%s289 + $0x120] sm:$0xff]
        %v338 = vld [vmem:[%s289 + $0x128] sm:$0xff]
        %v339 = vld [vmem:[%s289 + $0x130] sm:$0xff]
        %v340 = vld [vmem:[%s289 + $0x138] sm:$0xff]
        %v341 = vld [vmem:[%s289 + $0x140] sm:$0xff]
        %v342 = vld [vmem:[%s289 + $0x148] sm:$0xff]
        %v343 = vld [vmem:[%s289 + $0x150] sm:$0xff]
        %v344 = vld [vmem:[%s289 + $0x158] sm:$0xff]
        %v345 = vld [vmem:[%s289 + $0x160] sm:$0xff]
        %v346 = vld [vmem:[%s289 + $0x168] sm:$0xff]
        %v347 = vld [vmem:[%s289 + $0x170] sm:$0xff]
        %v348 = vld [vmem:[%s289 + $0x178] sm:$0xff]
        %v349 = vld [vmem:[%s289 + $0x180] sm:$0xff]
        %v350 = vld [vmem:[%s289 + $0x188] sm:$0xff]
        %v351 = vld [vmem:[%s289 + $0x190] sm:$0xff]
        %v352 = vld [vmem:[%s289 + $0x198] sm:$0xff]
        %v353 = vld [vmem:[%s289 + $0x1a0] sm:$0xff]
        %v354 = vld [vmem:[%s289 + $0x1a8] sm:$0xff]
        %v355 = vld [vmem:[%s289 + $0x1b0] sm:$0xff]
        %v356 = vld [vmem:[%s289 + $0x1b8] sm:$0xff]
        %v357 = vld [vmem:[%s289 + $0x1c0] sm:$0xff]
        %v358 = vld [vmem:[%s289 + $0x1c8] sm:$0xff]
        %v359 = vld [vmem:[%s289 + $0x1d0] sm:$0xff]
        %v360 = vld [vmem:[%s289 + $0x1d8] sm:$0xff]
        %v361 = vld [vmem:[%s289 + $0x1e0] sm:$0xff]
        %v362 = vld [vmem:[%s289 + $0x1e8] sm:$0xff]
        %v363 = vld [vmem:[%s289 + $0x1f0] sm:$0xff]
        %v364 = vpack.c.bf16 %v302, %v301
        %v365 = vpack.c.bf16 %v304, %v303
        %v366 = vpack.c.bf16 %v306, %v305
        %v367 = vpack.c.bf16 %v308, %v307
        %v368 = vpack.c.bf16 %v310, %v309
        %v369 = vpack.c.bf16 %v312, %v311
        %v370 = vpack.c.bf16 %v314, %v313
        %v371 = vpack.c.bf16 %v316, %v315
        %v372 = vpack.c.bf16 %v318, %v317
        %v373 = vpack.c.bf16 %v320, %v319
        %v374 = vpack.c.bf16 %v322, %v321
        %v375 = vpack.c.bf16 %v324, %v323
        %v376 = vpack.c.bf16 %v326, %v325
        %v377 = vpack.c.bf16 %v328, %v327
        %v378 = vpack.c.bf16 %v330, %v329
        %v379 = vpack.c.bf16 %v332, %v331
        %v380 = vpack.c.bf16 %v334, %v333
        %v381 = vpack.c.bf16 %v336, %v335
        %v382 = vpack.c.bf16 %v338, %v337
        %v383 = vpack.c.bf16 %v340, %v339
        %v384 = vpack.c.bf16 %v342, %v341
        %v385 = vpack.c.bf16 %v344, %v343
        %v386 = vpack.c.bf16 %v346, %v345
        %v387 = vpack.c.bf16 %v348, %v347
        %v388 = vpack.c.bf16 %v350, %v349
        %v389 = vpack.c.bf16 %v352, %v351
        %v390 = vpack.c.bf16 %v354, %v353
        %v391 = vpack.c.bf16 %v356, %v355
        %v392 = vpack.c.bf16 %v358, %v357
        %v393 = vpack.c.bf16 %v360, %v359
        %v394 = vpack.c.bf16 %v362, %v361
        %v395 = vpack.c.bf16 %v363, %v363
        %v396 = vld [vmem:[%s1] sm:$0xf]
        %v397 = vld [vmem:[%s1 + $0x4] sm:$0xf]
        %v398 = vld [vmem:[%s1 + $0x8] sm:$0xf]
        %v399 = vld [vmem:[%s1 + $0xc] sm:$0xf]
        %v400 = vld [vmem:[%s2] sm:$0x1]
        %v402 = vlaneseq
        %v403 = vshrl.u32 %v402, 7
        %v404 = vsub.s32 0, %v403
        %v405 = vrot.slane %v400, %v404
        %v411 = vunpack.c.l.b16 %v396
        %v412 = vunpack.c.l.b16 %v397
        %v413 = vunpack.c.l.b16 %v398
        %v414 = vunpack.c.l.b16 %v399
        %v415 = vpack.c.b16 %v412, %v411
        %v416 = vpack.c.b16 %v414, %v413
        %vm419 = vcmask 261120
        %v421 = vsel %vm419, %v364, 0
        %v424 = vsel %vm419, %v365, 0
        %v427 = vsel %vm419, %v366, 0
        %v430 = vsel %vm419, %v367, 0
        %v433 = vsel %vm419, %v368, 0
        %v436 = vsel %vm419, %v369, 0
        %v439 = vsel %vm419, %v370, 0
        %v442 = vsel %vm419, %v371, 0
        %v445 = vsel %vm419, %v372, 0
        %v448 = vsel %vm419, %v373, 0
        %v451 = vsel %vm419, %v374, 0
        %v454 = vsel %vm419, %v375, 0
        %v457 = vsel %vm419, %v376, 0
        %v460 = vsel %vm419, %v377, 0
        %v463 = vsel %vm419, %v378, 0
        %v466 = vsel %vm419, %v379, 0
        %v469 = vsel %vm419, %v380, 0
        %v472 = vsel %vm419, %v381, 0
        %v475 = vsel %vm419, %v382, 0
        %v478 = vsel %vm419, %v383, 0
        %v481 = vsel %vm419, %v384, 0
        %v484 = vsel %vm419, %v385, 0
        %v487 = vsel %vm419, %v386, 0
        %v490 = vsel %vm419, %v387, 0
        %v493 = vsel %vm419, %v388, 0
        %v496 = vsel %vm419, %v389, 0
        %v499 = vsel %vm419, %v390, 0
        %v502 = vsel %vm419, %v391, 0
        %v505 = vsel %vm419, %v392, 0
        %v508 = vsel %vm419, %v393, 0
        %v511 = vsel %vm419, %v394, 0
        %v514 = vsel %vm419, %v395, 0
        %516 = vmatprep.subr.bf16.mxu0 0
        %517 = vmatpush1.bf16.msra.mxu0 0
        %518 = vmatprep.subr.bf16.mxu0 0
        %519 = vmatpush1.bf16.msra.mxu0 0
        %520 = vmatprep.subr.bf16.mxu0 0
        %521 = vmatpush1.bf16.msra.mxu0 0
        %522 = vmatprep.subr.bf16.mxu0 0
        %523 = vmatpush1.bf16.msra.mxu0 0
        %524 = vmatprep.subr.bf16.mxu0 0
        %525 = vmatpush1.bf16.msra.mxu0 0
        %526 = vmatprep.subr.bf16.mxu0 0
        %527 = vmatpush1.bf16.msra.mxu0 0
        %528 = vmatprep.subr.bf16.mxu0 0
        %529 = vmatpush1.bf16.msra.mxu0 %v416
        %530 = vmatprep.subr.bf16.mxu0 0
        %531 = vmatpush1.bf16.msra.mxu0 %v415
        %532 = vmatprep.subr.bf16.mxu0 0
        %533 = vmatpush2.bf16.msra.mxu0 0
        %534 = vmatprep.subr.bf16.mxu0 0
        %535 = vmatpush2.bf16.msra.mxu0 0
        %536 = vmatprep.subr.bf16.mxu0 0
        %537 = vmatpush2.bf16.msra.mxu0 0
        %538 = vmatprep.subr.bf16.mxu0 0
        %539 = vmatpush2.bf16.msra.mxu0 0
        %540 = vmatprep.subr.bf16.mxu0 0
        %541 = vmatpush2.bf16.msra.mxu0 0
        %542 = vmatprep.subr.bf16.mxu0 0
        %543 = vmatpush2.bf16.msra.mxu0 0
        %544 = vmatprep.subr.bf16.mxu0 0
        %545 = vmatpush2.bf16.msra.mxu0 0
        %546 = vmatprep.subr.bf16.mxu0 0
        %547 = vmatpush2.bf16.msra.mxu0 0
        %548 = vmatprep.mubr.bf16.mxu0 0
        %549 = vmatmul.mubr.bf16.gmra.mxu0 %v421
        %v550 = vpop.f32.mrf.mxu0
        %v551 = vadd.f32 %v405, %v550
        %v552 = vpop.f32.mrf.mxu0
        %v553 = vpop.f32.mrf.mxu0
        %v554 = vadd.f32 %v405, %v553
        %v555 = vpop.f32.mrf.mxu0
        %556 = vmatprep.mubr.bf16.mxu0 0
        %557 = vmatmul.mubr.bf16.gmra.mxu0 %v424
        %v558 = vpop.f32.mrf.mxu0
        %v559 = vadd.f32 %v405, %v558
        %v560 = vpop.f32.mrf.mxu0
        %v561 = vpop.f32.mrf.mxu0
        %v562 = vadd.f32 %v405, %v561
        %v563 = vpop.f32.mrf.mxu0
        %564 = vmatprep.mubr.bf16.mxu0 0
        %565 = vmatmul.mubr.bf16.gmra.mxu0 %v427
        %v566 = vpop.f32.mrf.mxu0
        %v567 = vadd.f32 %v405, %v566
        %v568 = vpop.f32.mrf.mxu0
        %v569 = vpop.f32.mrf.mxu0
        %v570 = vadd.f32 %v405, %v569
        %v571 = vpop.f32.mrf.mxu0
        %572 = vmatprep.mubr.bf16.mxu0 0
        %573 = vmatmul.mubr.bf16.gmra.mxu0 %v430
        %v574 = vpop.f32.mrf.mxu0
        %v575 = vadd.f32 %v405, %v574
        %v576 = vpop.f32.mrf.mxu0
        %v577 = vpop.f32.mrf.mxu0
        %v578 = vadd.f32 %v405, %v577
        %v579 = vpop.f32.mrf.mxu0
        %580 = vmatprep.mubr.bf16.mxu0 0
        %581 = vmatmul.mubr.bf16.gmra.mxu0 %v433
        %v582 = vpop.f32.mrf.mxu0
        %v583 = vadd.f32 %v405, %v582
        %v584 = vpop.f32.mrf.mxu0
        %v585 = vpop.f32.mrf.mxu0
        %v586 = vadd.f32 %v405, %v585
        %v587 = vpop.f32.mrf.mxu0
        %588 = vmatprep.mubr.bf16.mxu0 0
        %589 = vmatmul.mubr.bf16.gmra.mxu0 %v436
        %v590 = vpop.f32.mrf.mxu0
        %v591 = vadd.f32 %v405, %v590
        %v592 = vpop.f32.mrf.mxu0
        %v593 = vpop.f32.mrf.mxu0
        %v594 = vadd.f32 %v405, %v593
        %v595 = vpop.f32.mrf.mxu0
        %596 = vmatprep.mubr.bf16.mxu0 0
        %597 = vmatmul.mubr.bf16.gmra.mxu0 %v439
        %v598 = vpop.f32.mrf.mxu0
        %v599 = vadd.f32 %v405, %v598
        %v600 = vpop.f32.mrf.mxu0
        %v601 = vpop.f32.mrf.mxu0
        %v602 = vadd.f32 %v405, %v601
        %v603 = vpop.f32.mrf.mxu0
        %604 = vmatprep.mubr.bf16.mxu0 0
        %605 = vmatmul.mubr.bf16.gmra.mxu0 %v442
        %v606 = vpop.f32.mrf.mxu0
        %v607 = vadd.f32 %v405, %v606
        %v608 = vpop.f32.mrf.mxu0
        %v609 = vpop.f32.mrf.mxu0
        %v610 = vadd.f32 %v405, %v609
        %v611 = vpop.f32.mrf.mxu0
        %612 = vmatprep.mubr.bf16.mxu0 0
        %613 = vmatmul.mubr.bf16.gmra.mxu0 %v445
        %v614 = vpop.f32.mrf.mxu0
        %v615 = vadd.f32 %v405, %v614
        %v616 = vpop.f32.mrf.mxu0
        %v617 = vpop.f32.mrf.mxu0
        %v618 = vadd.f32 %v405, %v617
        %v619 = vpop.f32.mrf.mxu0
        %620 = vmatprep.mubr.bf16.mxu0 0
        %621 = vmatmul.mubr.bf16.gmra.mxu0 %v448
        %v622 = vpop.f32.mrf.mxu0
        %v623 = vadd.f32 %v405, %v622
        %v624 = vpop.f32.mrf.mxu0
        %v625 = vpop.f32.mrf.mxu0
        %v626 = vadd.f32 %v405, %v625
        %v627 = vpop.f32.mrf.mxu0
        %628 = vmatprep.mubr.bf16.mxu0 0
        %629 = vmatmul.mubr.bf16.gmra.mxu0 %v451
        %v630 = vpop.f32.mrf.mxu0
        %v631 = vadd.f32 %v405, %v630
        %v632 = vpop.f32.mrf.mxu0
        %v633 = vpop.f32.mrf.mxu0
        %v634 = vadd.f32 %v405, %v633
        %v635 = vpop.f32.mrf.mxu0
        %636 = vmatprep.mubr.bf16.mxu0 0
        %637 = vmatmul.mubr.bf16.gmra.mxu0 %v454
        %v638 = vpop.f32.mrf.mxu0
        %v639 = vadd.f32 %v405, %v638
        %v640 = vpop.f32.mrf.mxu0
        %v641 = vpop.f32.mrf.mxu0
        %v642 = vadd.f32 %v405, %v641
        %v643 = vpop.f32.mrf.mxu0
        %644 = vmatprep.mubr.bf16.mxu0 0
        %645 = vmatmul.mubr.bf16.gmra.mxu0 %v457
        %v646 = vpop.f32.mrf.mxu0
        %v647 = vadd.f32 %v405, %v646
        %v648 = vpop.f32.mrf.mxu0
        %v649 = vpop.f32.mrf.mxu0
        %v650 = vadd.f32 %v405, %v649
        %v651 = vpop.f32.mrf.mxu0
        %652 = vmatprep.mubr.bf16.mxu0 0
        %653 = vmatmul.mubr.bf16.gmra.mxu0 %v460
        %v654 = vpop.f32.mrf.mxu0
        %v655 = vadd.f32 %v405, %v654
        %v656 = vpop.f32.mrf.mxu0
        %v657 = vpop.f32.mrf.mxu0
        %v658 = vadd.f32 %v405, %v657
        %v659 = vpop.f32.mrf.mxu0
        %660 = vmatprep.mubr.bf16.mxu0 0
        %661 = vmatmul.mubr.bf16.gmra.mxu0 %v463
        %v662 = vpop.f32.mrf.mxu0
        %v663 = vadd.f32 %v405, %v662
        %v664 = vpop.f32.mrf.mxu0
        %v665 = vpop.f32.mrf.mxu0
        %v666 = vadd.f32 %v405, %v665
        %v667 = vpop.f32.mrf.mxu0
        %668 = vmatprep.mubr.bf16.mxu0 0
        %669 = vmatmul.mubr.bf16.gmra.mxu0 %v466
        %v670 = vpop.f32.mrf.mxu0
        %v671 = vadd.f32 %v405, %v670
        %v672 = vpop.f32.mrf.mxu0
        %v673 = vpop.f32.mrf.mxu0
        %v674 = vadd.f32 %v405, %v673
        %v675 = vpop.f32.mrf.mxu0
        %676 = vmatprep.mubr.bf16.mxu0 0
        %677 = vmatmul.mubr.bf16.gmra.mxu0 %v469
        %v678 = vpop.f32.mrf.mxu0
        %v679 = vadd.f32 %v405, %v678
        %v680 = vpop.f32.mrf.mxu0
        %v681 = vpop.f32.mrf.mxu0
        %v682 = vadd.f32 %v405, %v681
        %v683 = vpop.f32.mrf.mxu0
        %684 = vmatprep.mubr.bf16.mxu0 0
        %685 = vmatmul.mubr.bf16.gmra.mxu0 %v472
        %v686 = vpop.f32.mrf.mxu0
        %v687 = vadd.f32 %v405, %v686
        %v688 = vpop.f32.mrf.mxu0
        %v689 = vpop.f32.mrf.mxu0
        %v690 = vadd.f32 %v405, %v689
        %v691 = vpop.f32.mrf.mxu0
        %692 = vmatprep.mubr.bf16.mxu0 0
        %693 = vmatmul.mubr.bf16.gmra.mxu0 %v475
        %v694 = vpop.f32.mrf.mxu0
        %v695 = vadd.f32 %v405, %v694
        %v696 = vpop.f32.mrf.mxu0
        %v697 = vpop.f32.mrf.mxu0
        %v698 = vadd.f32 %v405, %v697
        %v699 = vpop.f32.mrf.mxu0
        %700 = vmatprep.mubr.bf16.mxu0 0
        %701 = vmatmul.mubr.bf16.gmra.mxu0 %v478
        %v702 = vpop.f32.mrf.mxu0
        %v703 = vadd.f32 %v405, %v702
        %v704 = vpop.f32.mrf.mxu0
        %v705 = vpop.f32.mrf.mxu0
        %v706 = vadd.f32 %v405, %v705
        %v707 = vpop.f32.mrf.mxu0
        %708 = vmatprep.mubr.bf16.mxu0 0
        %709 = vmatmul.mubr.bf16.gmra.mxu0 %v481
        %v710 = vpop.f32.mrf.mxu0
        %v711 = vadd.f32 %v405, %v710
        %v712 = vpop.f32.mrf.mxu0
        %v713 = vpop.f32.mrf.mxu0
        %v714 = vadd.f32 %v405, %v713
        %v715 = vpop.f32.mrf.mxu0
        %716 = vmatprep.mubr.bf16.mxu0 0
        %717 = vmatmul.mubr.bf16.gmra.mxu0 %v484
        %v718 = vpop.f32.mrf.mxu0
        %v719 = vadd.f32 %v405, %v718
        %v720 = vpop.f32.mrf.mxu0
        %v721 = vpop.f32.mrf.mxu0
        %v722 = vadd.f32 %v405, %v721
        %v723 = vpop.f32.mrf.mxu0
        %724 = vmatprep.mubr.bf16.mxu0 0
        %725 = vmatmul.mubr.bf16.gmra.mxu0 %v487
        %v726 = vpop.f32.mrf.mxu0
        %v727 = vadd.f32 %v405, %v726
        %v728 = vpop.f32.mrf.mxu0
        %v729 = vpop.f32.mrf.mxu0
        %v730 = vadd.f32 %v405, %v729
        %v731 = vpop.f32.mrf.mxu0
        %732 = vmatprep.mubr.bf16.mxu0 0
        %733 = vmatmul.mubr.bf16.gmra.mxu0 %v490
        %v734 = vpop.f32.mrf.mxu0
        %v735 = vadd.f32 %v405, %v734
        %v736 = vpop.f32.mrf.mxu0
        %v737 = vpop.f32.mrf.mxu0
        %v738 = vadd.f32 %v405, %v737
        %v739 = vpop.f32.mrf.mxu0
        %740 = vmatprep.mubr.bf16.mxu0 0
        %741 = vmatmul.mubr.bf16.gmra.mxu0 %v493
        %v742 = vpop.f32.mrf.mxu0
        %v743 = vadd.f32 %v405, %v742
        %v744 = vpop.f32.mrf.mxu0
        %v745 = vpop.f32.mrf.mxu0
        %v746 = vadd.f32 %v405, %v745
        %v747 = vpop.f32.mrf.mxu0
        %748 = vmatprep.mubr.bf16.mxu0 0
        %749 = vmatmul.mubr.bf16.gmra.mxu0 %v496
        %v750 = vpop.f32.mrf.mxu0
        %v751 = vadd.f32 %v405, %v750
        %v752 = vpop.f32.mrf.mxu0
        %v753 = vpop.f32.mrf.mxu0
        %v754 = vadd.f32 %v405, %v753
        %v755 = vpop.f32.mrf.mxu0
        %756 = vmatprep.mubr.bf16.mxu0 0
        %757 = vmatmul.mubr.bf16.gmra.mxu0 %v499
        %v758 = vpop.f32.mrf.mxu0
        %v759 = vadd.f32 %v405, %v758
        %v760 = vpop.f32.mrf.mxu0
        %v761 = vpop.f32.mrf.mxu0
        %v762 = vadd.f32 %v405, %v761
        %v763 = vpop.f32.mrf.mxu0
        %764 = vmatprep.mubr.bf16.mxu0 0
        %765 = vmatmul.mubr.bf16.gmra.mxu0 %v502
        %v766 = vpop.f32.mrf.mxu0
        %v767 = vadd.f32 %v405, %v766
        %v768 = vpop.f32.mrf.mxu0
        %v769 = vpop.f32.mrf.mxu0
        %v770 = vadd.f32 %v405, %v769
        %v771 = vpop.f32.mrf.mxu0
        %772 = vmatprep.mubr.bf16.mxu0 0
        %773 = vmatmul.mubr.bf16.gmra.mxu0 %v505
        %v774 = vpop.f32.mrf.mxu0
        %v775 = vadd.f32 %v405, %v774
        %v776 = vpop.f32.mrf.mxu0
        %v777 = vpop.f32.mrf.mxu0
        %v778 = vadd.f32 %v405, %v777
        %v779 = vpop.f32.mrf.mxu0
        %780 = vmatprep.mubr.bf16.mxu0 0
        %781 = vmatmul.mubr.bf16.gmra.mxu0 %v508
        %v782 = vpop.f32.mrf.mxu0
        %v783 = vadd.f32 %v405, %v782
        %v784 = vpop.f32.mrf.mxu0
        %v785 = vpop.f32.mrf.mxu0
        %v786 = vadd.f32 %v405, %v785
        %v787 = vpop.f32.mrf.mxu0
        %788 = vmatprep.mubr.bf16.mxu0 0
        %789 = vmatmul.mubr.bf16.gmra.mxu0 %v511
        %v790 = vpop.f32.mrf.mxu0
        %v791 = vadd.f32 %v405, %v790
        %v792 = vpop.f32.mrf.mxu0
        %v793 = vpop.f32.mrf.mxu0
        %v794 = vadd.f32 %v405, %v793
        %v795 = vpop.f32.mrf.mxu0
        %796 = vmatprep.mubr.bf16.mxu0 0
        %797 = vmatmul.mubr.bf16.gmra.mxu0 %v514
        %v798 = vpop.f32.mrf.mxu0
        %v799 = vadd.f32 %v405, %v798
        %v800 = vpop.f32.mrf.mxu0
        %v801 = vpop.f32.mrf.mxu0
        %v802 = vpop.f32.mrf.mxu0
        %803 = vdwg.mxu0
        %v804 = vmax.f32 %v551, 0.0
        %v805 = vmax.f32 %v554, 0.0
        %v806 = vmax.f32 %v559, 0.0
        %v807 = vmax.f32 %v562, 0.0
        %v808 = vmax.f32 %v567, 0.0
        %v809 = vmax.f32 %v570, 0.0
        %v810 = vmax.f32 %v575, 0.0
        %v811 = vmax.f32 %v578, 0.0
        %v812 = vmax.f32 %v583, 0.0
        %v813 = vmax.f32 %v586, 0.0
        %v814 = vmax.f32 %v591, 0.0
        %v815 = vmax.f32 %v594, 0.0
        %v816 = vmax.f32 %v599, 0.0
        %v817 = vmax.f32 %v602, 0.0
        %v818 = vmax.f32 %v607, 0.0
        %v819 = vmax.f32 %v610, 0.0
        %v820 = vmax.f32 %v615, 0.0
        %v821 = vmax.f32 %v618, 0.0
        %v822 = vmax.f32 %v623, 0.0
        %v823 = vmax.f32 %v626, 0.0
        %v824 = vmax.f32 %v631, 0.0
        %v825 = vmax.f32 %v634, 0.0
        %v826 = vmax.f32 %v639, 0.0
        %v827 = vmax.f32 %v642, 0.0
        %v828 = vmax.f32 %v647, 0.0
        %v829 = vmax.f32 %v650, 0.0
        %v830 = vmax.f32 %v655, 0.0
        %v831 = vmax.f32 %v658, 0.0
        %v832 = vmax.f32 %v663, 0.0
        %v833 = vmax.f32 %v666, 0.0
        %v834 = vmax.f32 %v671, 0.0
        %v835 = vmax.f32 %v674, 0.0
        %v836 = vmax.f32 %v679, 0.0
        %v837 = vmax.f32 %v682, 0.0
        %v838 = vmax.f32 %v687, 0.0
        %v839 = vmax.f32 %v690, 0.0
        %v840 = vmax.f32 %v695, 0.0
        %v841 = vmax.f32 %v698, 0.0
        %v842 = vmax.f32 %v703, 0.0
        %v843 = vmax.f32 %v706, 0.0
        %v844 = vmax.f32 %v711, 0.0
        %v845 = vmax.f32 %v714, 0.0
        %v846 = vmax.f32 %v719, 0.0
        %v847 = vmax.f32 %v722, 0.0
        %v848 = vmax.f32 %v727, 0.0
        %v849 = vmax.f32 %v730, 0.0
        %v850 = vmax.f32 %v735, 0.0
        %v851 = vmax.f32 %v738, 0.0
        %v852 = vmax.f32 %v743, 0.0
        %v853 = vmax.f32 %v746, 0.0
        %v854 = vmax.f32 %v751, 0.0
        %v855 = vmax.f32 %v754, 0.0
        %v856 = vmax.f32 %v759, 0.0
        %v857 = vmax.f32 %v762, 0.0
        %v858 = vmax.f32 %v767, 0.0
        %v859 = vmax.f32 %v770, 0.0
        %v860 = vmax.f32 %v775, 0.0
        %v861 = vmax.f32 %v778, 0.0
        %v862 = vmax.f32 %v783, 0.0
        %v863 = vmax.f32 %v786, 0.0
        %v864 = vmax.f32 %v791, 0.0
        %v865 = vmax.f32 %v794, 0.0
        %v866 = vmax.f32 %v799, 0.0
        %v867 = vpack.c.bf16 %v805, %v804
        %v868 = vpack.c.bf16 %v807, %v806
        %v869 = vpack.c.bf16 %v809, %v808
        %v870 = vpack.c.bf16 %v811, %v810
        %v871 = vpack.c.bf16 %v813, %v812
        %v872 = vpack.c.bf16 %v815, %v814
        %v873 = vpack.c.bf16 %v817, %v816
        %v874 = vpack.c.bf16 %v819, %v818
        %v875 = vpack.c.bf16 %v821, %v820
        %v876 = vpack.c.bf16 %v823, %v822
        %v877 = vpack.c.bf16 %v825, %v824
        %v878 = vpack.c.bf16 %v827, %v826
        %v879 = vpack.c.bf16 %v829, %v828
        %v880 = vpack.c.bf16 %v831, %v830
        %v881 = vpack.c.bf16 %v833, %v832
        %v882 = vpack.c.bf16 %v835, %v834
        %v883 = vpack.c.bf16 %v837, %v836
        %v884 = vpack.c.bf16 %v839, %v838
        %v885 = vpack.c.bf16 %v841, %v840
        %v886 = vpack.c.bf16 %v843, %v842
        %v887 = vpack.c.bf16 %v845, %v844
        %v888 = vpack.c.bf16 %v847, %v846
        %v889 = vpack.c.bf16 %v849, %v848
        %v890 = vpack.c.bf16 %v851, %v850
        %v891 = vpack.c.bf16 %v853, %v852
        %v892 = vpack.c.bf16 %v855, %v854
        %v893 = vpack.c.bf16 %v857, %v856
        %v894 = vpack.c.bf16 %v859, %v858
        %v895 = vpack.c.bf16 %v861, %v860
        %v896 = vpack.c.bf16 %v863, %v862
        %v897 = vpack.c.bf16 %v865, %v864
        %v898 = vpack.c.bf16 %v866, %v866
        %v899 = vld [vmem:[%s3] sm:$0xf]
        %v900 = vld [vmem:[%s3 + $0x4] sm:$0xf]
        %v901 = vld [vmem:[%s3 + $0x8] sm:$0xf]
        %v902 = vld [vmem:[%s3 + $0xc] sm:$0xf]
        %v903 = vld [vmem:[%s3 + $0x10] sm:$0xf]
        %v904 = vld [vmem:[%s3 + $0x14] sm:$0xf]
        %v905 = vld [vmem:[%s3 + $0x18] sm:$0xf]
        %v906 = vld [vmem:[%s3 + $0x1c] sm:$0xf]
        %v907 = vld [vmem:[%s4] sm:$0x1]
        %v909 = vlaneseq
        %v910 = vshrl.u32 %v909, 7
        %v911 = vsub.s32 0, %v910
        %v912 = vrot.slane %v907, %v911
        %v922 = vunpack.c.l.b16 %v899
        %v923 = vunpack.c.l.b16 %v900
        %v924 = vunpack.c.l.b16 %v901
        %v925 = vunpack.c.l.b16 %v902
        %v926 = vunpack.c.l.b16 %v903
        %v927 = vunpack.c.l.b16 %v904
        %v928 = vunpack.c.l.b16 %v905
        %v929 = vunpack.c.l.b16 %v906
        %v930 = vpack.c.b16 %v923, %v922
        %v931 = vpack.c.b16 %v925, %v924
        %v932 = vpack.c.b16 %v927, %v926
        %v933 = vpack.c.b16 %v929, %v928
        %vm938 = vcmask 523264
        %v940 = vsel %vm938, %v867, 0
        %v943 = vsel %vm938, %v868, 0
        %v946 = vsel %vm938, %v869, 0
        %v949 = vsel %vm938, %v870, 0
        %v952 = vsel %vm938, %v871, 0
        %v955 = vsel %vm938, %v872, 0
        %v958 = vsel %vm938, %v873, 0
        %v961 = vsel %vm938, %v874, 0
        %v964 = vsel %vm938, %v875, 0
        %v967 = vsel %vm938, %v876, 0
        %v970 = vsel %vm938, %v877, 0
        %v973 = vsel %vm938, %v878, 0
        %v976 = vsel %vm938, %v879, 0
        %v979 = vsel %vm938, %v880, 0
        %v982 = vsel %vm938, %v881, 0
        %v985 = vsel %vm938, %v882, 0
        %v988 = vsel %vm938, %v883, 0
        %v991 = vsel %vm938, %v884, 0
        %v994 = vsel %vm938, %v885, 0
        %v997 = vsel %vm938, %v886, 0
        %v1000 = vsel %vm938, %v887, 0
        %v1003 = vsel %vm938, %v888, 0
        %v1006 = vsel %vm938, %v889, 0
        %v1009 = vsel %vm938, %v890, 0
        %v1012 = vsel %vm938, %v891, 0
        %v1015 = vsel %vm938, %v892, 0
        %v1018 = vsel %vm938, %v893, 0
        %v1021 = vsel %vm938, %v894, 0
        %v1024 = vsel %vm938, %v895, 0
        %v1027 = vsel %vm938, %v896, 0
        %v1030 = vsel %vm938, %v897, 0
        %v1033 = vsel %vm938, %v898, 0
        %1035 = vmatprep.subr.bf16.mxu0 0
        %1036 = vmatpush1.bf16.msra.mxu0 0
        %1037 = vmatprep.subr.bf16.mxu0 0
        %1038 = vmatpush1.bf16.msra.mxu0 0
        %1039 = vmatprep.subr.bf16.mxu0 0
        %1040 = vmatpush1.bf16.msra.mxu0 0
        %1041 = vmatprep.subr.bf16.mxu0 0
        %1042 = vmatpush1.bf16.msra.mxu0 0
        %1043 = vmatprep.subr.bf16.mxu0 0
        %1044 = vmatpush1.bf16.msra.mxu0 %v933
        %1045 = vmatprep.subr.bf16.mxu0 0
        %1046 = vmatpush1.bf16.msra.mxu0 %v932
        %1047 = vmatprep.subr.bf16.mxu0 0
        %1048 = vmatpush1.bf16.msra.mxu0 %v931
        %1049 = vmatprep.subr.bf16.mxu0 0
        %1050 = vmatpush1.bf16.msra.mxu0 %v930
        %1051 = vmatprep.subr.bf16.mxu0 0
        %1052 = vmatpush2.bf16.msra.mxu0 0
        %1053 = vmatprep.subr.bf16.mxu0 0
        %1054 = vmatpush2.bf16.msra.mxu0 0
        %1055 = vmatprep.subr.bf16.mxu0 0
        %1056 = vmatpush2.bf16.msra.mxu0 0
        %1057 = vmatprep.subr.bf16.mxu0 0
        %1058 = vmatpush2.bf16.msra.mxu0 0
        %1059 = vmatprep.subr.bf16.mxu0 0
        %1060 = vmatpush2.bf16.msra.mxu0 0
        %1061 = vmatprep.subr.bf16.mxu0 0
        %1062 = vmatpush2.bf16.msra.mxu0 0
        %1063 = vmatprep.subr.bf16.mxu0 0
        %1064 = vmatpush2.bf16.msra.mxu0 0
        %1065 = vmatprep.subr.bf16.mxu0 0
        %1066 = vmatpush2.bf16.msra.mxu0 0
        %1067 = vmatprep.mubr.bf16.mxu0 0
        %1068 = vmatmul.mubr.bf16.gmra.mxu0 %v940
        %v1069 = vpop.f32.mrf.mxu0
        %v1070 = vadd.f32 %v912, %v1069
        %v1071 = vpop.f32.mrf.mxu0
        %v1072 = vpop.f32.mrf.mxu0
        %v1073 = vadd.f32 %v912, %v1072
        %v1074 = vpop.f32.mrf.mxu0
        %1075 = vmatprep.mubr.bf16.mxu0 0
        %1076 = vmatmul.mubr.bf16.gmra.mxu0 %v943
        %v1077 = vpop.f32.mrf.mxu0
        %v1078 = vadd.f32 %v912, %v1077
        %v1079 = vpop.f32.mrf.mxu0
        %v1080 = vpop.f32.mrf.mxu0
        %v1081 = vadd.f32 %v912, %v1080
        %v1082 = vpop.f32.mrf.mxu0
        %1083 = vmatprep.mubr.bf16.mxu0 0
        %1084 = vmatmul.mubr.bf16.gmra.mxu0 %v946
        %v1085 = vpop.f32.mrf.mxu0
        %v1086 = vadd.f32 %v912, %v1085
        %v1087 = vpop.f32.mrf.mxu0
        %v1088 = vpop.f32.mrf.mxu0
        %v1089 = vadd.f32 %v912, %v1088
        %v1090 = vpop.f32.mrf.mxu0
        %1091 = vmatprep.mubr.bf16.mxu0 0
        %1092 = vmatmul.mubr.bf16.gmra.mxu0 %v949
        %v1093 = vpop.f32.mrf.mxu0
        %v1094 = vadd.f32 %v912, %v1093
        %v1095 = vpop.f32.mrf.mxu0
        %v1096 = vpop.f32.mrf.mxu0
        %v1097 = vadd.f32 %v912, %v1096
        %v1098 = vpop.f32.mrf.mxu0
        %1099 = vmatprep.mubr.bf16.mxu0 0
        %1100 = vmatmul.mubr.bf16.gmra.mxu0 %v952
        %v1101 = vpop.f32.mrf.mxu0
        %v1102 = vadd.f32 %v912, %v1101
        %v1103 = vpop.f32.mrf.mxu0
        %v1104 = vpop.f32.mrf.mxu0
        %v1105 = vadd.f32 %v912, %v1104
        %v1106 = vpop.f32.mrf.mxu0
        %1107 = vmatprep.mubr.bf16.mxu0 0
        %1108 = vmatmul.mubr.bf16.gmra.mxu0 %v955
        %v1109 = vpop.f32.mrf.mxu0
        %v1110 = vadd.f32 %v912, %v1109
        %v1111 = vpop.f32.mrf.mxu0
        %v1112 = vpop.f32.mrf.mxu0
        %v1113 = vadd.f32 %v912, %v1112
        %v1114 = vpop.f32.mrf.mxu0
        %1115 = vmatprep.mubr.bf16.mxu0 0
        %1116 = vmatmul.mubr.bf16.gmra.mxu0 %v958
        %v1117 = vpop.f32.mrf.mxu0
        %v1118 = vadd.f32 %v912, %v1117
        %v1119 = vpop.f32.mrf.mxu0
        %v1120 = vpop.f32.mrf.mxu0
        %v1121 = vadd.f32 %v912, %v1120
        %v1122 = vpop.f32.mrf.mxu0
        %1123 = vmatprep.mubr.bf16.mxu0 0
        %1124 = vmatmul.mubr.bf16.gmra.mxu0 %v961
        %v1125 = vpop.f32.mrf.mxu0
        %v1126 = vadd.f32 %v912, %v1125
        %v1127 = vpop.f32.mrf.mxu0
        %v1128 = vpop.f32.mrf.mxu0
        %v1129 = vadd.f32 %v912, %v1128
        %v1130 = vpop.f32.mrf.mxu0
        %1131 = vmatprep.mubr.bf16.mxu0 0
        %1132 = vmatmul.mubr.bf16.gmra.mxu0 %v964
        %v1133 = vpop.f32.mrf.mxu0
        %v1134 = vadd.f32 %v912, %v1133
        %v1135 = vpop.f32.mrf.mxu0
        %v1136 = vpop.f32.mrf.mxu0
        %v1137 = vadd.f32 %v912, %v1136
        %v1138 = vpop.f32.mrf.mxu0
        %1139 = vmatprep.mubr.bf16.mxu0 0
        %1140 = vmatmul.mubr.bf16.gmra.mxu0 %v967
        %v1141 = vpop.f32.mrf.mxu0
        %v1142 = vadd.f32 %v912, %v1141
        %v1143 = vpop.f32.mrf.mxu0
        %v1144 = vpop.f32.mrf.mxu0
        %v1145 = vadd.f32 %v912, %v1144
        %v1146 = vpop.f32.mrf.mxu0
        %1147 = vmatprep.mubr.bf16.mxu0 0
        %1148 = vmatmul.mubr.bf16.gmra.mxu0 %v970
        %v1149 = vpop.f32.mrf.mxu0
        %v1150 = vadd.f32 %v912, %v1149
        %v1151 = vpop.f32.mrf.mxu0
        %v1152 = vpop.f32.mrf.mxu0
        %v1153 = vadd.f32 %v912, %v1152
        %v1154 = vpop.f32.mrf.mxu0
        %1155 = vmatprep.mubr.bf16.mxu0 0
        %1156 = vmatmul.mubr.bf16.gmra.mxu0 %v973
        %v1157 = vpop.f32.mrf.mxu0
        %v1158 = vadd.f32 %v912, %v1157
        %v1159 = vpop.f32.mrf.mxu0
        %v1160 = vpop.f32.mrf.mxu0
        %v1161 = vadd.f32 %v912, %v1160
        %v1162 = vpop.f32.mrf.mxu0
        %1163 = vmatprep.mubr.bf16.mxu0 0
        %1164 = vmatmul.mubr.bf16.gmra.mxu0 %v976
        %v1165 = vpop.f32.mrf.mxu0
        %v1166 = vadd.f32 %v912, %v1165
        %v1167 = vpop.f32.mrf.mxu0
        %v1168 = vpop.f32.mrf.mxu0
        %v1169 = vadd.f32 %v912, %v1168
        %v1170 = vpop.f32.mrf.mxu0
        %1171 = vmatprep.mubr.bf16.mxu0 0
        %1172 = vmatmul.mubr.bf16.gmra.mxu0 %v979
        %v1173 = vpop.f32.mrf.mxu0
        %v1174 = vadd.f32 %v912, %v1173
        %v1175 = vpop.f32.mrf.mxu0
        %v1176 = vpop.f32.mrf.mxu0
        %v1177 = vadd.f32 %v912, %v1176
        %v1178 = vpop.f32.mrf.mxu0
        %1179 = vmatprep.mubr.bf16.mxu0 0
        %1180 = vmatmul.mubr.bf16.gmra.mxu0 %v982
        %v1181 = vpop.f32.mrf.mxu0
        %v1182 = vadd.f32 %v912, %v1181
        %v1183 = vpop.f32.mrf.mxu0
        %v1184 = vpop.f32.mrf.mxu0
        %v1185 = vadd.f32 %v912, %v1184
        %v1186 = vpop.f32.mrf.mxu0
        %1187 = vmatprep.mubr.bf16.mxu0 0
        %1188 = vmatmul.mubr.bf16.gmra.mxu0 %v985
        %v1189 = vpop.f32.mrf.mxu0
        %v1190 = vadd.f32 %v912, %v1189
        %v1191 = vpop.f32.mrf.mxu0
        %v1192 = vpop.f32.mrf.mxu0
        %v1193 = vadd.f32 %v912, %v1192
        %v1194 = vpop.f32.mrf.mxu0
        %1195 = vmatprep.mubr.bf16.mxu0 0
        %1196 = vmatmul.mubr.bf16.gmra.mxu0 %v988
        %v1197 = vpop.f32.mrf.mxu0
        %v1198 = vadd.f32 %v912, %v1197
        %v1199 = vpop.f32.mrf.mxu0
        %v1200 = vpop.f32.mrf.mxu0
        %v1201 = vadd.f32 %v912, %v1200
        %v1202 = vpop.f32.mrf.mxu0
        %1203 = vmatprep.mubr.bf16.mxu0 0
        %1204 = vmatmul.mubr.bf16.gmra.mxu0 %v991
        %v1205 = vpop.f32.mrf.mxu0
        %v1206 = vadd.f32 %v912, %v1205
        %v1207 = vpop.f32.mrf.mxu0
        %v1208 = vpop.f32.mrf.mxu0
        %v1209 = vadd.f32 %v912, %v1208
        %v1210 = vpop.f32.mrf.mxu0
        %1211 = vmatprep.mubr.bf16.mxu0 0
        %1212 = vmatmul.mubr.bf16.gmra.mxu0 %v994
        %v1213 = vpop.f32.mrf.mxu0
        %v1214 = vadd.f32 %v912, %v1213
        %v1215 = vpop.f32.mrf.mxu0
        %v1216 = vpop.f32.mrf.mxu0
        %v1217 = vadd.f32 %v912, %v1216
        %v1218 = vpop.f32.mrf.mxu0
        %1219 = vmatprep.mubr.bf16.mxu0 0
        %1220 = vmatmul.mubr.bf16.gmra.mxu0 %v997
        %v1221 = vpop.f32.mrf.mxu0
        %v1222 = vadd.f32 %v912, %v1221
        %v1223 = vpop.f32.mrf.mxu0
        %v1224 = vpop.f32.mrf.mxu0
        %v1225 = vadd.f32 %v912, %v1224
        %v1226 = vpop.f32.mrf.mxu0
        %1227 = vmatprep.mubr.bf16.mxu0 0
        %1228 = vmatmul.mubr.bf16.gmra.mxu0 %v1000
        %v1229 = vpop.f32.mrf.mxu0
        %v1230 = vadd.f32 %v912, %v1229
        %v1231 = vpop.f32.mrf.mxu0
        %v1232 = vpop.f32.mrf.mxu0
        %v1233 = vadd.f32 %v912, %v1232
        %v1234 = vpop.f32.mrf.mxu0
        %1235 = vmatprep.mubr.bf16.mxu0 0
        %1236 = vmatmul.mubr.bf16.gmra.mxu0 %v1003
        %v1237 = vpop.f32.mrf.mxu0
        %v1238 = vadd.f32 %v912, %v1237
        %v1239 = vpop.f32.mrf.mxu0
        %v1240 = vpop.f32.mrf.mxu0
        %v1241 = vadd.f32 %v912, %v1240
        %v1242 = vpop.f32.mrf.mxu0
        %1243 = vmatprep.mubr.bf16.mxu0 0
        %1244 = vmatmul.mubr.bf16.gmra.mxu0 %v1006
        %v1245 = vpop.f32.mrf.mxu0
        %v1246 = vadd.f32 %v912, %v1245
        %v1247 = vpop.f32.mrf.mxu0
        %v1248 = vpop.f32.mrf.mxu0
        %v1249 = vadd.f32 %v912, %v1248
        %v1250 = vpop.f32.mrf.mxu0
        %1251 = vmatprep.mubr.bf16.mxu0 0
        %1252 = vmatmul.mubr.bf16.gmra.mxu0 %v1009
        %v1253 = vpop.f32.mrf.mxu0
        %v1254 = vadd.f32 %v912, %v1253
        %v1255 = vpop.f32.mrf.mxu0
        %v1256 = vpop.f32.mrf.mxu0
        %v1257 = vadd.f32 %v912, %v1256
        %v1258 = vpop.f32.mrf.mxu0
        %1259 = vmatprep.mubr.bf16.mxu0 0
        %1260 = vmatmul.mubr.bf16.gmra.mxu0 %v1012
        %v1261 = vpop.f32.mrf.mxu0
        %v1262 = vadd.f32 %v912, %v1261
        %v1263 = vpop.f32.mrf.mxu0
        %v1264 = vpop.f32.mrf.mxu0
        %v1265 = vadd.f32 %v912, %v1264
        %v1266 = vpop.f32.mrf.mxu0
        %1267 = vmatprep.mubr.bf16.mxu0 0
        %1268 = vmatmul.mubr.bf16.gmra.mxu0 %v1015
        %v1269 = vpop.f32.mrf.mxu0
        %v1270 = vadd.f32 %v912, %v1269
        %v1271 = vpop.f32.mrf.mxu0
        %v1272 = vpop.f32.mrf.mxu0
        %v1273 = vadd.f32 %v912, %v1272
        %v1274 = vpop.f32.mrf.mxu0
        %1275 = vmatprep.mubr.bf16.mxu0 0
        %1276 = vmatmul.mubr.bf16.gmra.mxu0 %v1018
        %v1277 = vpop.f32.mrf.mxu0
        %v1278 = vadd.f32 %v912, %v1277
        %v1279 = vpop.f32.mrf.mxu0
        %v1280 = vpop.f32.mrf.mxu0
        %v1281 = vadd.f32 %v912, %v1280
        %v1282 = vpop.f32.mrf.mxu0
        %1283 = vmatprep.mubr.bf16.mxu0 0
        %1284 = vmatmul.mubr.bf16.gmra.mxu0 %v1021
        %v1285 = vpop.f32.mrf.mxu0
        %v1286 = vadd.f32 %v912, %v1285
        %v1287 = vpop.f32.mrf.mxu0
        %v1288 = vpop.f32.mrf.mxu0
        %v1289 = vadd.f32 %v912, %v1288
        %v1290 = vpop.f32.mrf.mxu0
        %1291 = vmatprep.mubr.bf16.mxu0 0
        %1292 = vmatmul.mubr.bf16.gmra.mxu0 %v1024
        %v1293 = vpop.f32.mrf.mxu0
        %v1294 = vadd.f32 %v912, %v1293
        %v1295 = vpop.f32.mrf.mxu0
        %v1296 = vpop.f32.mrf.mxu0
        %v1297 = vadd.f32 %v912, %v1296
        %v1298 = vpop.f32.mrf.mxu0
        %1299 = vmatprep.mubr.bf16.mxu0 0
        %1300 = vmatmul.mubr.bf16.gmra.mxu0 %v1027
        %v1301 = vpop.f32.mrf.mxu0
        %v1302 = vadd.f32 %v912, %v1301
        %v1303 = vpop.f32.mrf.mxu0
        %v1304 = vpop.f32.mrf.mxu0
        %v1305 = vadd.f32 %v912, %v1304
        %v1306 = vpop.f32.mrf.mxu0
        %1307 = vmatprep.mubr.bf16.mxu0 0
        %1308 = vmatmul.mubr.bf16.gmra.mxu0 %v1030
        %v1309 = vpop.f32.mrf.mxu0
        %v1310 = vadd.f32 %v912, %v1309
        %v1311 = vpop.f32.mrf.mxu0
        %v1312 = vpop.f32.mrf.mxu0
        %v1313 = vadd.f32 %v912, %v1312
        %v1314 = vpop.f32.mrf.mxu0
        %1315 = vmatprep.mubr.bf16.mxu0 0
        %1316 = vmatmul.mubr.bf16.gmra.mxu0 %v1033
        %v1317 = vpop.f32.mrf.mxu0
        %v1318 = vadd.f32 %v912, %v1317
        %v1319 = vpop.f32.mrf.mxu0
        %v1320 = vpop.f32.mrf.mxu0
        %v1321 = vpop.f32.mrf.mxu0
        %1322 = vdwg.mxu0
        %v1323 = vmax.f32 %v1070, 0.0
        %v1324 = vmax.f32 %v1073, 0.0
        %v1325 = vmax.f32 %v1078, 0.0
        %v1326 = vmax.f32 %v1081, 0.0
        %v1327 = vmax.f32 %v1086, 0.0
        %v1328 = vmax.f32 %v1089, 0.0
        %v1329 = vmax.f32 %v1094, 0.0
        %v1330 = vmax.f32 %v1097, 0.0
        %v1331 = vmax.f32 %v1102, 0.0
        %v1332 = vmax.f32 %v1105, 0.0
        %v1333 = vmax.f32 %v1110, 0.0
        %v1334 = vmax.f32 %v1113, 0.0
        %v1335 = vmax.f32 %v1118, 0.0
        %v1336 = vmax.f32 %v1121, 0.0
        %v1337 = vmax.f32 %v1126, 0.0
        %v1338 = vmax.f32 %v1129, 0.0
        %v1339 = vmax.f32 %v1134, 0.0
        %v1340 = vmax.f32 %v1137, 0.0
        %v1341 = vmax.f32 %v1142, 0.0
        %v1342 = vmax.f32 %v1145, 0.0
        %v1343 = vmax.f32 %v1150, 0.0
        %v1344 = vmax.f32 %v1153, 0.0
        %v1345 = vmax.f32 %v1158, 0.0
        %v1346 = vmax.f32 %v1161, 0.0
        %v1347 = vmax.f32 %v1166, 0.0
        %v1348 = vmax.f32 %v1169, 0.0
        %v1349 = vmax.f32 %v1174, 0.0
        %v1350 = vmax.f32 %v1177, 0.0
        %v1351 = vmax.f32 %v1182, 0.0
        %v1352 = vmax.f32 %v1185, 0.0
        %v1353 = vmax.f32 %v1190, 0.0
        %v1354 = vmax.f32 %v1193, 0.0
        %v1355 = vmax.f32 %v1198, 0.0
        %v1356 = vmax.f32 %v1201, 0.0
        %v1357 = vmax.f32 %v1206, 0.0
        %v1358 = vmax.f32 %v1209, 0.0
        %v1359 = vmax.f32 %v1214, 0.0
        %v1360 = vmax.f32 %v1217, 0.0
        %v1361 = vmax.f32 %v1222, 0.0
        %v1362 = vmax.f32 %v1225, 0.0
        %v1363 = vmax.f32 %v1230, 0.0
        %v1364 = vmax.f32 %v1233, 0.0
        %v1365 = vmax.f32 %v1238, 0.0
        %v1366 = vmax.f32 %v1241, 0.0
        %v1367 = vmax.f32 %v1246, 0.0
        %v1368 = vmax.f32 %v1249, 0.0
        %v1369 = vmax.f32 %v1254, 0.0
        %v1370 = vmax.f32 %v1257, 0.0
        %v1371 = vmax.f32 %v1262, 0.0
        %v1372 = vmax.f32 %v1265, 0.0
        %v1373 = vmax.f32 %v1270, 0.0
        %v1374 = vmax.f32 %v1273, 0.0
        %v1375 = vmax.f32 %v1278, 0.0
        %v1376 = vmax.f32 %v1281, 0.0
        %v1377 = vmax.f32 %v1286, 0.0
        %v1378 = vmax.f32 %v1289, 0.0
        %v1379 = vmax.f32 %v1294, 0.0
        %v1380 = vmax.f32 %v1297, 0.0
        %v1381 = vmax.f32 %v1302, 0.0
        %v1382 = vmax.f32 %v1305, 0.0
        %v1383 = vmax.f32 %v1310, 0.0
        %v1384 = vmax.f32 %v1313, 0.0
        %v1385 = vmax.f32 %v1318, 0.0
        %v1386 = vpack.c.bf16 %v1324, %v1323
        %v1387 = vpack.c.bf16 %v1326, %v1325
        %v1388 = vpack.c.bf16 %v1328, %v1327
        %v1389 = vpack.c.bf16 %v1330, %v1329
        %v1390 = vpack.c.bf16 %v1332, %v1331
        %v1391 = vpack.c.bf16 %v1334, %v1333
        %v1392 = vpack.c.bf16 %v1336, %v1335
        %v1393 = vpack.c.bf16 %v1338, %v1337
        %v1394 = vpack.c.bf16 %v1340, %v1339
        %v1395 = vpack.c.bf16 %v1342, %v1341
        %v1396 = vpack.c.bf16 %v1344, %v1343
        %v1397 = vpack.c.bf16 %v1346, %v1345
        %v1398 = vpack.c.bf16 %v1348, %v1347
        %v1399 = vpack.c.bf16 %v1350, %v1349
        %v1400 = vpack.c.bf16 %v1352, %v1351
        %v1401 = vpack.c.bf16 %v1354, %v1353
        %v1402 = vpack.c.bf16 %v1356, %v1355
        %v1403 = vpack.c.bf16 %v1358, %v1357
        %v1404 = vpack.c.bf16 %v1360, %v1359
        %v1405 = vpack.c.bf16 %v1362, %v1361
        %v1406 = vpack.c.bf16 %v1364, %v1363
        %v1407 = vpack.c.bf16 %v1366, %v1365
        %v1408 = vpack.c.bf16 %v1368, %v1367
        %v1409 = vpack.c.bf16 %v1370, %v1369
        %v1410 = vpack.c.bf16 %v1372, %v1371
        %v1411 = vpack.c.bf16 %v1374, %v1373
        %v1412 = vpack.c.bf16 %v1376, %v1375
        %v1413 = vpack.c.bf16 %v1378, %v1377
        %v1414 = vpack.c.bf16 %v1380, %v1379
        %v1415 = vpack.c.bf16 %v1382, %v1381
        %v1416 = vpack.c.bf16 %v1384, %v1383
        %v1417 = vpack.c.bf16 %v1385, %v1385
        %v1418 = vld [vmem:[%s5] sm:$0xf]
        %v1419 = vld [vmem:[%s5 + $0x4] sm:$0xf]
        %v1420 = vld [vmem:[%s5 + $0x8] sm:$0xf]
        %v1421 = vld [vmem:[%s5 + $0xc] sm:$0xf]
        %v1422 = vld [vmem:[%s6] sm:$0x1]
        %v1424 = vlaneseq
        %v1425 = vshrl.u32 %v1424, 7
        %v1426 = vsub.s32 0, %v1425
        %v1427 = vrot.slane %v1422, %v1426
        %v1433 = vunpack.c.l.b16 %v1418
        %v1434 = vunpack.c.l.b16 %v1419
        %v1435 = vunpack.c.l.b16 %v1420
        %v1436 = vunpack.c.l.b16 %v1421
        %v1437 = vpack.c.b16 %v1434, %v1433
        %v1438 = vpack.c.b16 %v1436, %v1435
        %v1442 = vsel %vm419, %v1386, 0
        %v1445 = vsel %vm419, %v1387, 0
        %v1448 = vsel %vm419, %v1388, 0
        %v1451 = vsel %vm419, %v1389, 0
        %v1454 = vsel %vm419, %v1390, 0
        %v1457 = vsel %vm419, %v1391, 0
        %v1460 = vsel %vm419, %v1392, 0
        %v1463 = vsel %vm419, %v1393, 0
        %v1466 = vsel %vm419, %v1394, 0
        %v1469 = vsel %vm419, %v1395, 0
        %v1472 = vsel %vm419, %v1396, 0
        %v1475 = vsel %vm419, %v1397, 0
        %v1478 = vsel %vm419, %v1398, 0
        %v1481 = vsel %vm419, %v1399, 0
        %v1484 = vsel %vm419, %v1400, 0
        %v1487 = vsel %vm419, %v1401, 0
        %v1490 = vsel %vm419, %v1402, 0
        %v1493 = vsel %vm419, %v1403, 0
        %v1496 = vsel %vm419, %v1404, 0
        %v1499 = vsel %vm419, %v1405, 0
        %v1502 = vsel %vm419, %v1406, 0
        %v1505 = vsel %vm419, %v1407, 0
        %v1508 = vsel %vm419, %v1408, 0
        %v1511 = vsel %vm419, %v1409, 0
        %v1514 = vsel %vm419, %v1410, 0
        %v1517 = vsel %vm419, %v1411, 0
        %v1520 = vsel %vm419, %v1412, 0
        %v1523 = vsel %vm419, %v1413, 0
        %v1526 = vsel %vm419, %v1414, 0
        %v1529 = vsel %vm419, %v1415, 0
        %v1532 = vsel %vm419, %v1416, 0
        %v1535 = vsel %vm419, %v1417, 0
        %1537 = vmatprep.subr.bf16.mxu0 0
        %1538 = vmatpush1.bf16.msra.mxu0 0
        %1539 = vmatprep.subr.bf16.mxu0 0
        %1540 = vmatpush1.bf16.msra.mxu0 0
        %1541 = vmatprep.subr.bf16.mxu0 0
        %1542 = vmatpush1.bf16.msra.mxu0 0
        %1543 = vmatprep.subr.bf16.mxu0 0
        %1544 = vmatpush1.bf16.msra.mxu0 0
        %1545 = vmatprep.subr.bf16.mxu0 0
        %1546 = vmatpush1.bf16.msra.mxu0 0
        %1547 = vmatprep.subr.bf16.mxu0 0
        %1548 = vmatpush1.bf16.msra.mxu0 0
        %1549 = vmatprep.subr.bf16.mxu0 0
        %1550 = vmatpush1.bf16.msra.mxu0 %v1438
        %1551 = vmatprep.subr.bf16.mxu0 0
        %1552 = vmatpush1.bf16.msra.mxu0 %v1437
        %1553 = vmatprep.subr.bf16.mxu0 0
        %1554 = vmatpush2.bf16.msra.mxu0 0
        %1555 = vmatprep.subr.bf16.mxu0 0
        %1556 = vmatpush2.bf16.msra.mxu0 0
        %1557 = vmatprep.subr.bf16.mxu0 0
        %1558 = vmatpush2.bf16.msra.mxu0 0
        %1559 = vmatprep.subr.bf16.mxu0 0
        %1560 = vmatpush2.bf16.msra.mxu0 0
        %1561 = vmatprep.subr.bf16.mxu0 0
        %1562 = vmatpush2.bf16.msra.mxu0 0
        %1563 = vmatprep.subr.bf16.mxu0 0
        %1564 = vmatpush2.bf16.msra.mxu0 0
        %1565 = vmatprep.subr.bf16.mxu0 0
        %1566 = vmatpush2.bf16.msra.mxu0 0
        %1567 = vmatprep.subr.bf16.mxu0 0
        %1568 = vmatpush2.bf16.msra.mxu0 0
        %1569 = vmatprep.mubr.bf16.mxu0 0
        %1570 = vmatmul.mubr.bf16.gmra.mxu0 %v1442
        %v1571 = vpop.f32.mrf.mxu0
        %v1572 = vadd.f32 %v1427, %v1571
        %v1573 = vpop.f32.mrf.mxu0
        %v1574 = vpop.f32.mrf.mxu0
        %v1575 = vadd.f32 %v1427, %v1574
        %v1576 = vpop.f32.mrf.mxu0
        %1577 = vmatprep.mubr.bf16.mxu0 0
        %1578 = vmatmul.mubr.bf16.gmra.mxu0 %v1445
        %v1579 = vpop.f32.mrf.mxu0
        %v1580 = vadd.f32 %v1427, %v1579
        %v1581 = vpop.f32.mrf.mxu0
        %v1582 = vpop.f32.mrf.mxu0
        %v1583 = vadd.f32 %v1427, %v1582
        %v1584 = vpop.f32.mrf.mxu0
        %1585 = vmatprep.mubr.bf16.mxu0 0
        %1586 = vmatmul.mubr.bf16.gmra.mxu0 %v1448
        %v1587 = vpop.f32.mrf.mxu0
        %v1588 = vadd.f32 %v1427, %v1587
        %v1589 = vpop.f32.mrf.mxu0
        %v1590 = vpop.f32.mrf.mxu0
        %v1591 = vadd.f32 %v1427, %v1590
        %v1592 = vpop.f32.mrf.mxu0
        %1593 = vmatprep.mubr.bf16.mxu0 0
        %1594 = vmatmul.mubr.bf16.gmra.mxu0 %v1451
        %v1595 = vpop.f32.mrf.mxu0
        %v1596 = vadd.f32 %v1427, %v1595
        %v1597 = vpop.f32.mrf.mxu0
        %v1598 = vpop.f32.mrf.mxu0
        %v1599 = vadd.f32 %v1427, %v1598
        %v1600 = vpop.f32.mrf.mxu0
        %1601 = vmatprep.mubr.bf16.mxu0 0
        %1602 = vmatmul.mubr.bf16.gmra.mxu0 %v1454
        %v1603 = vpop.f32.mrf.mxu0
        %v1604 = vadd.f32 %v1427, %v1603
        %v1605 = vpop.f32.mrf.mxu0
        %v1606 = vpop.f32.mrf.mxu0
        %v1607 = vadd.f32 %v1427, %v1606
        %v1608 = vpop.f32.mrf.mxu0
        %1609 = vmatprep.mubr.bf16.mxu0 0
        %1610 = vmatmul.mubr.bf16.gmra.mxu0 %v1457
        %v1611 = vpop.f32.mrf.mxu0
        %v1612 = vadd.f32 %v1427, %v1611
        %v1613 = vpop.f32.mrf.mxu0
        %v1614 = vpop.f32.mrf.mxu0
        %v1615 = vadd.f32 %v1427, %v1614
        %v1616 = vpop.f32.mrf.mxu0
        %1617 = vmatprep.mubr.bf16.mxu0 0
        %1618 = vmatmul.mubr.bf16.gmra.mxu0 %v1460
        %v1619 = vpop.f32.mrf.mxu0
        %v1620 = vadd.f32 %v1427, %v1619
        %v1621 = vpop.f32.mrf.mxu0
        %v1622 = vpop.f32.mrf.mxu0
        %v1623 = vadd.f32 %v1427, %v1622
        %v1624 = vpop.f32.mrf.mxu0
        %1625 = vmatprep.mubr.bf16.mxu0 0
        %1626 = vmatmul.mubr.bf16.gmra.mxu0 %v1463
        %v1627 = vpop.f32.mrf.mxu0
        %v1628 = vadd.f32 %v1427, %v1627
        %v1629 = vpop.f32.mrf.mxu0
        %v1630 = vpop.f32.mrf.mxu0
        %v1631 = vadd.f32 %v1427, %v1630
        %v1632 = vpop.f32.mrf.mxu0
        %1633 = vmatprep.mubr.bf16.mxu0 0
        %1634 = vmatmul.mubr.bf16.gmra.mxu0 %v1466
        %v1635 = vpop.f32.mrf.mxu0
        %v1636 = vadd.f32 %v1427, %v1635
        %v1637 = vpop.f32.mrf.mxu0
        %v1638 = vpop.f32.mrf.mxu0
        %v1639 = vadd.f32 %v1427, %v1638
        %v1640 = vpop.f32.mrf.mxu0
        %1641 = vmatprep.mubr.bf16.mxu0 0
        %1642 = vmatmul.mubr.bf16.gmra.mxu0 %v1469
        %v1643 = vpop.f32.mrf.mxu0
        %v1644 = vadd.f32 %v1427, %v1643
        %v1645 = vpop.f32.mrf.mxu0
        %v1646 = vpop.f32.mrf.mxu0
        %v1647 = vadd.f32 %v1427, %v1646
        %v1648 = vpop.f32.mrf.mxu0
        %1649 = vmatprep.mubr.bf16.mxu0 0
        %1650 = vmatmul.mubr.bf16.gmra.mxu0 %v1472
        %v1651 = vpop.f32.mrf.mxu0
        %v1652 = vadd.f32 %v1427, %v1651
        %v1653 = vpop.f32.mrf.mxu0
        %v1654 = vpop.f32.mrf.mxu0
        %v1655 = vadd.f32 %v1427, %v1654
        %v1656 = vpop.f32.mrf.mxu0
        %1657 = vmatprep.mubr.bf16.mxu0 0
        %1658 = vmatmul.mubr.bf16.gmra.mxu0 %v1475
        %v1659 = vpop.f32.mrf.mxu0
        %v1660 = vadd.f32 %v1427, %v1659
        %v1661 = vpop.f32.mrf.mxu0
        %v1662 = vpop.f32.mrf.mxu0
        %v1663 = vadd.f32 %v1427, %v1662
        %v1664 = vpop.f32.mrf.mxu0
        %1665 = vmatprep.mubr.bf16.mxu0 0
        %1666 = vmatmul.mubr.bf16.gmra.mxu0 %v1478
        %v1667 = vpop.f32.mrf.mxu0
        %v1668 = vadd.f32 %v1427, %v1667
        %v1669 = vpop.f32.mrf.mxu0
        %v1670 = vpop.f32.mrf.mxu0
        %v1671 = vadd.f32 %v1427, %v1670
        %v1672 = vpop.f32.mrf.mxu0
        %1673 = vmatprep.mubr.bf16.mxu0 0
        %1674 = vmatmul.mubr.bf16.gmra.mxu0 %v1481
        %v1675 = vpop.f32.mrf.mxu0
        %v1676 = vadd.f32 %v1427, %v1675
        %v1677 = vpop.f32.mrf.mxu0
        %v1678 = vpop.f32.mrf.mxu0
        %v1679 = vadd.f32 %v1427, %v1678
        %v1680 = vpop.f32.mrf.mxu0
        %1681 = vmatprep.mubr.bf16.mxu0 0
        %1682 = vmatmul.mubr.bf16.gmra.mxu0 %v1484
        %v1683 = vpop.f32.mrf.mxu0
        %v1684 = vadd.f32 %v1427, %v1683
        %v1685 = vpop.f32.mrf.mxu0
        %v1686 = vpop.f32.mrf.mxu0
        %v1687 = vadd.f32 %v1427, %v1686
        %v1688 = vpop.f32.mrf.mxu0
        %1689 = vmatprep.mubr.bf16.mxu0 0
        %1690 = vmatmul.mubr.bf16.gmra.mxu0 %v1487
        %v1691 = vpop.f32.mrf.mxu0
        %v1692 = vadd.f32 %v1427, %v1691
        %v1693 = vpop.f32.mrf.mxu0
        %v1694 = vpop.f32.mrf.mxu0
        %v1695 = vadd.f32 %v1427, %v1694
        %v1696 = vpop.f32.mrf.mxu0
        %1697 = vmatprep.mubr.bf16.mxu0 0
        %1698 = vmatmul.mubr.bf16.gmra.mxu0 %v1490
        %v1699 = vpop.f32.mrf.mxu0
        %v1700 = vadd.f32 %v1427, %v1699
        %v1701 = vpop.f32.mrf.mxu0
        %v1702 = vpop.f32.mrf.mxu0
        %v1703 = vadd.f32 %v1427, %v1702
        %v1704 = vpop.f32.mrf.mxu0
        %1705 = vmatprep.mubr.bf16.mxu0 0
        %1706 = vmatmul.mubr.bf16.gmra.mxu0 %v1493
        %v1707 = vpop.f32.mrf.mxu0
        %v1708 = vadd.f32 %v1427, %v1707
        %v1709 = vpop.f32.mrf.mxu0
        %v1710 = vpop.f32.mrf.mxu0
        %v1711 = vadd.f32 %v1427, %v1710
        %v1712 = vpop.f32.mrf.mxu0
        %1713 = vmatprep.mubr.bf16.mxu0 0
        %1714 = vmatmul.mubr.bf16.gmra.mxu0 %v1496
        %v1715 = vpop.f32.mrf.mxu0
        %v1716 = vadd.f32 %v1427, %v1715
        %v1717 = vpop.f32.mrf.mxu0
        %v1718 = vpop.f32.mrf.mxu0
        %v1719 = vadd.f32 %v1427, %v1718
        %v1720 = vpop.f32.mrf.mxu0
        %1721 = vmatprep.mubr.bf16.mxu0 0
        %1722 = vmatmul.mubr.bf16.gmra.mxu0 %v1499
        %v1723 = vpop.f32.mrf.mxu0
        %v1724 = vadd.f32 %v1427, %v1723
        %v1725 = vpop.f32.mrf.mxu0
        %v1726 = vpop.f32.mrf.mxu0
        %v1727 = vadd.f32 %v1427, %v1726
        %v1728 = vpop.f32.mrf.mxu0
        %1729 = vmatprep.mubr.bf16.mxu0 0
        %1730 = vmatmul.mubr.bf16.gmra.mxu0 %v1502
        %v1731 = vpop.f32.mrf.mxu0
        %v1732 = vadd.f32 %v1427, %v1731
        %v1733 = vpop.f32.mrf.mxu0
        %v1734 = vpop.f32.mrf.mxu0
        %v1735 = vadd.f32 %v1427, %v1734
        %v1736 = vpop.f32.mrf.mxu0
        %1737 = vmatprep.mubr.bf16.mxu0 0
        %1738 = vmatmul.mubr.bf16.gmra.mxu0 %v1505
        %v1739 = vpop.f32.mrf.mxu0
        %v1740 = vadd.f32 %v1427, %v1739
        %v1741 = vpop.f32.mrf.mxu0
        %v1742 = vpop.f32.mrf.mxu0
        %v1743 = vadd.f32 %v1427, %v1742
        %v1744 = vpop.f32.mrf.mxu0
        %1745 = vmatprep.mubr.bf16.mxu0 0
        %1746 = vmatmul.mubr.bf16.gmra.mxu0 %v1508
        %v1747 = vpop.f32.mrf.mxu0
        %v1748 = vadd.f32 %v1427, %v1747
        %v1749 = vpop.f32.mrf.mxu0
        %v1750 = vpop.f32.mrf.mxu0
        %v1751 = vadd.f32 %v1427, %v1750
        %v1752 = vpop.f32.mrf.mxu0
        %1753 = vmatprep.mubr.bf16.mxu0 0
        %1754 = vmatmul.mubr.bf16.gmra.mxu0 %v1511
        %v1755 = vpop.f32.mrf.mxu0
        %v1756 = vadd.f32 %v1427, %v1755
        %v1757 = vpop.f32.mrf.mxu0
        %v1758 = vpop.f32.mrf.mxu0
        %v1759 = vadd.f32 %v1427, %v1758
        %v1760 = vpop.f32.mrf.mxu0
        %1761 = vmatprep.mubr.bf16.mxu0 0
        %1762 = vmatmul.mubr.bf16.gmra.mxu0 %v1514
        %v1763 = vpop.f32.mrf.mxu0
        %v1764 = vadd.f32 %v1427, %v1763
        %v1765 = vpop.f32.mrf.mxu0
        %v1766 = vpop.f32.mrf.mxu0
        %v1767 = vadd.f32 %v1427, %v1766
        %v1768 = vpop.f32.mrf.mxu0
        %1769 = vmatprep.mubr.bf16.mxu0 0
        %1770 = vmatmul.mubr.bf16.gmra.mxu0 %v1517
        %v1771 = vpop.f32.mrf.mxu0
        %v1772 = vadd.f32 %v1427, %v1771
        %v1773 = vpop.f32.mrf.mxu0
        %v1774 = vpop.f32.mrf.mxu0
        %v1775 = vadd.f32 %v1427, %v1774
        %v1776 = vpop.f32.mrf.mxu0
        %1777 = vmatprep.mubr.bf16.mxu0 0
        %1778 = vmatmul.mubr.bf16.gmra.mxu0 %v1520
        %v1779 = vpop.f32.mrf.mxu0
        %v1780 = vadd.f32 %v1427, %v1779
        %v1781 = vpop.f32.mrf.mxu0
        %v1782 = vpop.f32.mrf.mxu0
        %v1783 = vadd.f32 %v1427, %v1782
        %v1784 = vpop.f32.mrf.mxu0
        %1785 = vmatprep.mubr.bf16.mxu0 0
        %1786 = vmatmul.mubr.bf16.gmra.mxu0 %v1523
        %v1787 = vpop.f32.mrf.mxu0
        %v1788 = vadd.f32 %v1427, %v1787
        %v1789 = vpop.f32.mrf.mxu0
        %v1790 = vpop.f32.mrf.mxu0
        %v1791 = vadd.f32 %v1427, %v1790
        %v1792 = vpop.f32.mrf.mxu0
        %1793 = vmatprep.mubr.bf16.mxu0 0
        %1794 = vmatmul.mubr.bf16.gmra.mxu0 %v1526
        %v1795 = vpop.f32.mrf.mxu0
        %v1796 = vadd.f32 %v1427, %v1795
        %v1797 = vpop.f32.mrf.mxu0
        %v1798 = vpop.f32.mrf.mxu0
        %v1799 = vadd.f32 %v1427, %v1798
        %v1800 = vpop.f32.mrf.mxu0
        %1801 = vmatprep.mubr.bf16.mxu0 0
        %1802 = vmatmul.mubr.bf16.gmra.mxu0 %v1529
        %v1803 = vpop.f32.mrf.mxu0
        %v1804 = vadd.f32 %v1427, %v1803
        %v1805 = vpop.f32.mrf.mxu0
        %v1806 = vpop.f32.mrf.mxu0
        %v1807 = vadd.f32 %v1427, %v1806
        %v1808 = vpop.f32.mrf.mxu0
        %1809 = vmatprep.mubr.bf16.mxu0 0
        %1810 = vmatmul.mubr.bf16.gmra.mxu0 %v1532
        %v1811 = vpop.f32.mrf.mxu0
        %v1812 = vadd.f32 %v1427, %v1811
        %v1813 = vpop.f32.mrf.mxu0
        %v1814 = vpop.f32.mrf.mxu0
        %v1815 = vadd.f32 %v1427, %v1814
        %v1816 = vpop.f32.mrf.mxu0
        %1817 = vmatprep.mubr.bf16.mxu0 0
        %1818 = vmatmul.mubr.bf16.gmra.mxu0 %v1535
        %v1819 = vpop.f32.mrf.mxu0
        %v1820 = vadd.f32 %v1427, %v1819
        %v1821 = vpop.f32.mrf.mxu0
        %v1822 = vpop.f32.mrf.mxu0
        %v1823 = vpop.f32.mrf.mxu0
        %1824 = vdwg.mxu0
        %vm1825 = vcmask 64512
        %1826 = vst.msk [vmem:[%s280] sm:$0xff] %vm1825, %v1572
        %1827 = vst.msk [vmem:[%s280 + $0x8] sm:$0xff] %vm1825, %v1575
        %1828 = vst.msk [vmem:[%s280 + $0x10] sm:$0xff] %vm1825, %v1580
        %1829 = vst.msk [vmem:[%s280 + $0x18] sm:$0xff] %vm1825, %v1583
        %1830 = vst.msk [vmem:[%s280 + $0x20] sm:$0xff] %vm1825, %v1588
        %1831 = vst.msk [vmem:[%s280 + $0x28] sm:$0xff] %vm1825, %v1591
        %1832 = vst.msk [vmem:[%s280 + $0x30] sm:$0xff] %vm1825, %v1596
        %1833 = vst.msk [vmem:[%s280 + $0x38] sm:$0xff] %vm1825, %v1599
        %1834 = vst.msk [vmem:[%s280 + $0x40] sm:$0xff] %vm1825, %v1604
        %1835 = vst.msk [vmem:[%s280 + $0x48] sm:$0xff] %vm1825, %v1607
        %1836 = vst.msk [vmem:[%s280 + $0x50] sm:$0xff] %vm1825, %v1612
        %1837 = vst.msk [vmem:[%s280 + $0x58] sm:$0xff] %vm1825, %v1615
        %1838 = vst.msk [vmem:[%s280 + $0x60] sm:$0xff] %vm1825, %v1620
        %1839 = vst.msk [vmem:[%s280 + $0x68] sm:$0xff] %vm1825, %v1623
        %1840 = vst.msk [vmem:[%s280 + $0x70] sm:$0xff] %vm1825, %v1628
        %1841 = vst.msk [vmem:[%s280 + $0x78] sm:$0xff] %vm1825, %v1631
        %1842 = vst.msk [vmem:[%s280 + $0x80] sm:$0xff] %vm1825, %v1636
        %1843 = vst.msk [vmem:[%s280 + $0x88] sm:$0xff] %vm1825, %v1639
        %1844 = vst.msk [vmem:[%s280 + $0x90] sm:$0xff] %vm1825, %v1644
        %1845 = vst.msk [vmem:[%s280 + $0x98] sm:$0xff] %vm1825, %v1647
        %1846 = vst.msk [vmem:[%s280 + $0xa0] sm:$0xff] %vm1825, %v1652
        %1847 = vst.msk [vmem:[%s280 + $0xa8] sm:$0xff] %vm1825, %v1655
        %1848 = vst.msk [vmem:[%s280 + $0xb0] sm:$0xff] %vm1825, %v1660
        %1849 = vst.msk [vmem:[%s280 + $0xb8] sm:$0xff] %vm1825, %v1663
        %1850 = vst.msk [vmem:[%s280 + $0xc0] sm:$0xff] %vm1825, %v1668
        %1851 = vst.msk [vmem:[%s280 + $0xc8] sm:$0xff] %vm1825, %v1671
        %1852 = vst.msk [vmem:[%s280 + $0xd0] sm:$0xff] %vm1825, %v1676
        %1853 = vst.msk [vmem:[%s280 + $0xd8] sm:$0xff] %vm1825, %v1679
        %1854 = vst.msk [vmem:[%s280 + $0xe0] sm:$0xff] %vm1825, %v1684
        %1855 = vst.msk [vmem:[%s280 + $0xe8] sm:$0xff] %vm1825, %v1687
        %1856 = vst.msk [vmem:[%s280 + $0xf0] sm:$0xff] %vm1825, %v1692
        %1857 = vst.msk [vmem:[%s280 + $0xf8] sm:$0xff] %vm1825, %v1695
        %1858 = vst.msk [vmem:[%s280 + $0x100] sm:$0xff] %vm1825, %v1700
        %1859 = vst.msk [vmem:[%s280 + $0x108] sm:$0xff] %vm1825, %v1703
        %1860 = vst.msk [vmem:[%s280 + $0x110] sm:$0xff] %vm1825, %v1708
        %1861 = vst.msk [vmem:[%s280 + $0x118] sm:$0xff] %vm1825, %v1711
        %1862 = vst.msk [vmem:[%s280 + $0x120] sm:$0xff] %vm1825, %v1716
        %1863 = vst.msk [vmem:[%s280 + $0x128] sm:$0xff] %vm1825, %v1719
        %1864 = vst.msk [vmem:[%s280 + $0x130] sm:$0xff] %vm1825, %v1724
        %1865 = vst.msk [vmem:[%s280 + $0x138] sm:$0xff] %vm1825, %v1727
        %1866 = vst.msk [vmem:[%s280 + $0x140] sm:$0xff] %vm1825, %v1732
        %1867 = vst.msk [vmem:[%s280 + $0x148] sm:$0xff] %vm1825, %v1735
        %1868 = vst.msk [vmem:[%s280 + $0x150] sm:$0xff] %vm1825, %v1740
        %1869 = vst.msk [vmem:[%s280 + $0x158] sm:$0xff] %vm1825, %v1743
        %1870 = vst.msk [vmem:[%s280 + $0x160] sm:$0xff] %vm1825, %v1748
        %1871 = vst.msk [vmem:[%s280 + $0x168] sm:$0xff] %vm1825, %v1751
        %1872 = vst.msk [vmem:[%s280 + $0x170] sm:$0xff] %vm1825, %v1756
        %1873 = vst.msk [vmem:[%s280 + $0x178] sm:$0xff] %vm1825, %v1759
        %1874 = vst.msk [vmem:[%s280 + $0x180] sm:$0xff] %vm1825, %v1764
        %1875 = vst.msk [vmem:[%s280 + $0x188] sm:$0xff] %vm1825, %v1767
        %1876 = vst.msk [vmem:[%s280 + $0x190] sm:$0xff] %vm1825, %v1772
        %1877 = vst.msk [vmem:[%s280 + $0x198] sm:$0xff] %vm1825, %v1775
        %1878 = vst.msk [vmem:[%s280 + $0x1a0] sm:$0xff] %vm1825, %v1780
        %1879 = vst.msk [vmem:[%s280 + $0x1a8] sm:$0xff] %vm1825, %v1783
        %1880 = vst.msk [vmem:[%s280 + $0x1b0] sm:$0xff] %vm1825, %v1788
        %1881 = vst.msk [vmem:[%s280 + $0x1b8] sm:$0xff] %vm1825, %v1791
        %1882 = vst.msk [vmem:[%s280 + $0x1c0] sm:$0xff] %vm1825, %v1796
        %1883 = vst.msk [vmem:[%s280 + $0x1c8] sm:$0xff] %vm1825, %v1799
        %1884 = vst.msk [vmem:[%s280 + $0x1d0] sm:$0xff] %vm1825, %v1804
        %1885 = vst.msk [vmem:[%s280 + $0x1d8] sm:$0xff] %vm1825, %v1807
        %1886 = vst.msk [vmem:[%s280 + $0x1e0] sm:$0xff] %vm1825, %v1812
        %1887 = vst.msk [vmem:[%s280 + $0x1e8] sm:$0xff] %vm1825, %v1815
        %1888 = vst.msk [vmem:[%s280 + $0x1f0] sm:$0xff] %vm1825, %v1820
        %s1889 = sand.u32 %s178, 1
        %s1890 = sand.u32 %s178, 1
        %s1891 = smul.addr %s1890, 504
        %s1892 = scalar_lea.vmem [#allocation2], %s1891
        // Predicated region
        $region49: #{tpu_custom_call.1} parent=47 // pred_check
          %p1893 = pneg %p188
        $region50: #{tpu_custom_call.1} parent=47 // pred_check_branch
          %1895 = sbr.rel (%p1893) target = $region52
        $region51: #{tpu_custom_call.1} parent=47 // pred_region
          %s1896 = smul.u32 63, %s18
          %s1897 = ssub.s32 125, %s1896
          %p1898 = scmp.lt.s32.totalorder %s1897, 63
          %s1899 = scalar_select %p1898, %s1897, 63
          %s1900 = smul.u32 128, %s1899
          %p1901 = scmp.ne.s32.totalorder 0, %s1900
          %s1902 = smul.addr %s1896, 8
          %s1903 = scalar_lea.vmem %s7, %s1902
          // Predicated region
          $region53: #{tpu_custom_call.1} parent=51 // pred_check
            %p1904 = pneg %p1901
          $region54: #{tpu_custom_call.1} parent=51 // pred_check_branch
            %1906 = sbr.rel (%p1904) target = $region56
          $region55: #{tpu_custom_call.1} parent=51 // pred_region
            // Predicated region
            $region57: #{tpu_custom_call.1} parent=55 // pred_check
              _
            $region58: #{tpu_custom_call.1} parent=55 // pred_check_branch
              %1908 = sbr.rel (0) target = $region60
            $region59: #{tpu_custom_call.1} parent=55 // pred_region
              // Predicated region
              $region79: #{tpu_custom_call.1} parent=59 // pred_check
                _
              $region80: #{tpu_custom_call.1} parent=59 // pred_check_branch
                %2083 = sbr.rel (0) target = $region82
              $region81: #{tpu_custom_call.1} parent=59 // pred_region
                %s2084 = sdiv.u32.pop %s1899, 63
                %s2085 = srem.u32.pop %s1899, 63
                // While loop
                $region83: #{tpu_custom_call.1} parent=81 // loop_pre_header
                  _
                $region84: #{tpu_custom_call.1} parent=81 // loop_header
                  %s2087 = sphi 0, %s2089
                  %p2088 = scmp.ge.s32.totalorder %s2087, %s2084
                  %s2092 = sphi 0, %s2223
                  %s2093 = sphi %s1892, %s2226
                  %s2094 = sphi %s1903, %s2227
                $region85: #{tpu_custom_call.1} parent=81 // loop_header_branch
                  %2091 = sbr.rel (%p2088) target = $region89
                $region86: #{tpu_custom_call.1} parent=81 // loop_body
                  %v2095 = vld [vmem:[%s2093] sm:$0xff]
                  %2096 = vst [vmem:[%s2094] sm:$0xff] %v2095
                  %v2097 = vld [vmem:[%s2093 + $0x8] sm:$0xff]
                  %2098 = vst [vmem:[%s2094 + $0x8] sm:$0xff] %v2097
                  %v2099 = vld [vmem:[%s2093 + $0x10] sm:$0xff]
                  %2100 = vst [vmem:[%s2094 + $0x10] sm:$0xff] %v2099
                  %v2101 = vld [vmem:[%s2093 + $0x18] sm:$0xff]
                  %2102 = vst [vmem:[%s2094 + $0x18] sm:$0xff] %v2101
                  %v2103 = vld [vmem:[%s2093 + $0x20] sm:$0xff]
                  %2104 = vst [vmem:[%s2094 + $0x20] sm:$0xff] %v2103
                  %v2105 = vld [vmem:[%s2093 + $0x28] sm:$0xff]
                  %2106 = vst [vmem:[%s2094 + $0x28] sm:$0xff] %v2105
                  %v2107 = vld [vmem:[%s2093 + $0x30] sm:$0xff]
                  %2108 = vst [vmem:[%s2094 + $0x30] sm:$0xff] %v2107
                  %v2109 = vld [vmem:[%s2093 + $0x38] sm:$0xff]
                  %2110 = vst [vmem:[%s2094 + $0x38] sm:$0xff] %v2109
                  %v2111 = vld [vmem:[%s2093 + $0x40] sm:$0xff]
                  %2112 = vst [vmem:[%s2094 + $0x40] sm:$0xff] %v2111
                  %v2113 = vld [vmem:[%s2093 + $0x48] sm:$0xff]
                  %2114 = vst [vmem:[%s2094 + $0x48] sm:$0xff] %v2113
                  %v2115 = vld [vmem:[%s2093 + $0x50] sm:$0xff]
                  %2116 = vst [vmem:[%s2094 + $0x50] sm:$0xff] %v2115
                  %v2117 = vld [vmem:[%s2093 + $0x58] sm:$0xff]
                  %2118 = vst [vmem:[%s2094 + $0x58] sm:$0xff] %v2117
                  %v2119 = vld [vmem:[%s2093 + $0x60] sm:$0xff]
                  %2120 = vst [vmem:[%s2094 + $0x60] sm:$0xff] %v2119
                  %v2121 = vld [vmem:[%s2093 + $0x68] sm:$0xff]
                  %2122 = vst [vmem:[%s2094 + $0x68] sm:$0xff] %v2121
                  %v2123 = vld [vmem:[%s2093 + $0x70] sm:$0xff]
                  %2124 = vst [vmem:[%s2094 + $0x70] sm:$0xff] %v2123
                  %v2125 = vld [vmem:[%s2093 + $0x78] sm:$0xff]
                  %2126 = vst [vmem:[%s2094 + $0x78] sm:$0xff] %v2125
                  %v2127 = vld [vmem:[%s2093 + $0x80] sm:$0xff]
                  %2128 = vst [vmem:[%s2094 + $0x80] sm:$0xff] %v2127
                  %v2129 = vld [vmem:[%s2093 + $0x88] sm:$0xff]
                  %2130 = vst [vmem:[%s2094 + $0x88] sm:$0xff] %v2129
                  %v2131 = vld [vmem:[%s2093 + $0x90] sm:$0xff]
                  %2132 = vst [vmem:[%s2094 + $0x90] sm:$0xff] %v2131
                  %v2133 = vld [vmem:[%s2093 + $0x98] sm:$0xff]
                  %2134 = vst [vmem:[%s2094 + $0x98] sm:$0xff] %v2133
                  %v2135 = vld [vmem:[%s2093 + $0xa0] sm:$0xff]
                  %2136 = vst [vmem:[%s2094 + $0xa0] sm:$0xff] %v2135
                  %v2137 = vld [vmem:[%s2093 + $0xa8] sm:$0xff]
                  %2138 = vst [vmem:[%s2094 + $0xa8] sm:$0xff] %v2137
                  %v2139 = vld [vmem:[%s2093 + $0xb0] sm:$0xff]
                  %2140 = vst [vmem:[%s2094 + $0xb0] sm:$0xff] %v2139
                  %v2141 = vld [vmem:[%s2093 + $0xb8] sm:$0xff]
                  %2142 = vst [vmem:[%s2094 + $0xb8] sm:$0xff] %v2141
                  %v2143 = vld [vmem:[%s2093 + $0xc0] sm:$0xff]
                  %2144 = vst [vmem:[%s2094 + $0xc0] sm:$0xff] %v2143
                  %v2145 = vld [vmem:[%s2093 + $0xc8] sm:$0xff]
                  %2146 = vst [vmem:[%s2094 + $0xc8] sm:$0xff] %v2145
                  %v2147 = vld [vmem:[%s2093 + $0xd0] sm:$0xff]
                  %2148 = vst [vmem:[%s2094 + $0xd0] sm:$0xff] %v2147
                  %v2149 = vld [vmem:[%s2093 + $0xd8] sm:$0xff]
                  %2150 = vst [vmem:[%s2094 + $0xd8] sm:$0xff] %v2149
                  %v2151 = vld [vmem:[%s2093 + $0xe0] sm:$0xff]
                  %2152 = vst [vmem:[%s2094 + $0xe0] sm:$0xff] %v2151
                  %v2153 = vld [vmem:[%s2093 + $0xe8] sm:$0xff]
                  %2154 = vst [vmem:[%s2094 + $0xe8] sm:$0xff] %v2153
                  %v2155 = vld [vmem:[%s2093 + $0xf0] sm:$0xff]
                  %2156 = vst [vmem:[%s2094 + $0xf0] sm:$0xff] %v2155
                  %v2157 = vld [vmem:[%s2093 + $0xf8] sm:$0xff]
                  %2158 = vst [vmem:[%s2094 + $0xf8] sm:$0xff] %v2157
                  %v2159 = vld [vmem:[%s2093 + $0x100] sm:$0xff]
                  %2160 = vst [vmem:[%s2094 + $0x100] sm:$0xff] %v2159
                  %v2161 = vld [vmem:[%s2093 + $0x108] sm:$0xff]
                  %2162 = vst [vmem:[%s2094 + $0x108] sm:$0xff] %v2161
                  %v2163 = vld [vmem:[%s2093 + $0x110] sm:$0xff]
                  %2164 = vst [vmem:[%s2094 + $0x110] sm:$0xff] %v2163
                  %v2165 = vld [vmem:[%s2093 + $0x118] sm:$0xff]
                  %2166 = vst [vmem:[%s2094 + $0x118] sm:$0xff] %v2165
                  %v2167 = vld [vmem:[%s2093 + $0x120] sm:$0xff]
                  %2168 = vst [vmem:[%s2094 + $0x120] sm:$0xff] %v2167
                  %v2169 = vld [vmem:[%s2093 + $0x128] sm:$0xff]
                  %2170 = vst [vmem:[%s2094 + $0x128] sm:$0xff] %v2169
                  %v2171 = vld [vmem:[%s2093 + $0x130] sm:$0xff]
                  %2172 = vst [vmem:[%s2094 + $0x130] sm:$0xff] %v2171
                  %v2173 = vld [vmem:[%s2093 + $0x138] sm:$0xff]
                  %2174 = vst [vmem:[%s2094 + $0x138] sm:$0xff] %v2173
                  %v2175 = vld [vmem:[%s2093 + $0x140] sm:$0xff]
                  %2176 = vst [vmem:[%s2094 + $0x140] sm:$0xff] %v2175
                  %v2177 = vld [vmem:[%s2093 + $0x148] sm:$0xff]
                  %2178 = vst [vmem:[%s2094 + $0x148] sm:$0xff] %v2177
                  %v2179 = vld [vmem:[%s2093 + $0x150] sm:$0xff]
                  %2180 = vst [vmem:[%s2094 + $0x150] sm:$0xff] %v2179
                  %v2181 = vld [vmem:[%s2093 + $0x158] sm:$0xff]
                  %2182 = vst [vmem:[%s2094 + $0x158] sm:$0xff] %v2181
                  %v2183 = vld [vmem:[%s2093 + $0x160] sm:$0xff]
                  %2184 = vst [vmem:[%s2094 + $0x160] sm:$0xff] %v2183
                  %v2185 = vld [vmem:[%s2093 + $0x168] sm:$0xff]
                  %2186 = vst [vmem:[%s2094 + $0x168] sm:$0xff] %v2185
                  %v2187 = vld [vmem:[%s2093 + $0x170] sm:$0xff]
                  %2188 = vst [vmem:[%s2094 + $0x170] sm:$0xff] %v2187
                  %v2189 = vld [vmem:[%s2093 + $0x178] sm:$0xff]
                  %2190 = vst [vmem:[%s2094 + $0x178] sm:$0xff] %v2189
                  %v2191 = vld [vmem:[%s2093 + $0x180] sm:$0xff]
                  %2192 = vst [vmem:[%s2094 + $0x180] sm:$0xff] %v2191
                  %v2193 = vld [vmem:[%s2093 + $0x188] sm:$0xff]
                  %2194 = vst [vmem:[%s2094 + $0x188] sm:$0xff] %v2193
                  %v2195 = vld [vmem:[%s2093 + $0x190] sm:$0xff]
                  %2196 = vst [vmem:[%s2094 + $0x190] sm:$0xff] %v2195
                  %v2197 = vld [vmem:[%s2093 + $0x198] sm:$0xff]
                  %2198 = vst [vmem:[%s2094 + $0x198] sm:$0xff] %v2197
                  %v2199 = vld [vmem:[%s2093 + $0x1a0] sm:$0xff]
                  %2200 = vst [vmem:[%s2094 + $0x1a0] sm:$0xff] %v2199
                  %v2201 = vld [vmem:[%s2093 + $0x1a8] sm:$0xff]
                  %2202 = vst [vmem:[%s2094 + $0x1a8] sm:$0xff] %v2201
                  %v2203 = vld [vmem:[%s2093 + $0x1b0] sm:$0xff]
                  %2204 = vst [vmem:[%s2094 + $0x1b0] sm:$0xff] %v2203
                  %v2205 = vld [vmem:[%s2093 + $0x1b8] sm:$0xff]
                  %2206 = vst [vmem:[%s2094 + $0x1b8] sm:$0xff] %v2205
                  %v2207 = vld [vmem:[%s2093 + $0x1c0] sm:$0xff]
                  %2208 = vst [vmem:[%s2094 + $0x1c0] sm:$0xff] %v2207
                  %v2209 = vld [vmem:[%s2093 + $0x1c8] sm:$0xff]
                  %2210 = vst [vmem:[%s2094 + $0x1c8] sm:$0xff] %v2209
                  %v2211 = vld [vmem:[%s2093 + $0x1d0] sm:$0xff]
                  %2212 = vst [vmem:[%s2094 + $0x1d0] sm:$0xff] %v2211
                  %v2213 = vld [vmem:[%s2093 + $0x1d8] sm:$0xff]
                  %2214 = vst [vmem:[%s2094 + $0x1d8] sm:$0xff] %v2213
                  %v2215 = vld [vmem:[%s2093 + $0x1e0] sm:$0xff]
                  %2216 = vst [vmem:[%s2094 + $0x1e0] sm:$0xff] %v2215
                  %v2217 = vld [vmem:[%s2093 + $0x1e8] sm:$0xff]
                  %2218 = vst [vmem:[%s2094 + $0x1e8] sm:$0xff] %v2217
                  %v2219 = vld [vmem:[%s2093 + $0x1f0] sm:$0xff]
                  %2220 = vst [vmem:[%s2094 + $0x1f0] sm:$0xff] %v2219
                  %s2221 = sadd.s32 1, %s2092
                  %p2222 = scmp.ge.s32.totalorder %s2221, %s2084
                  %s2223 = scalar_select %p2222, 0, %s2221
                  %s2224 = smul.u32 %s2223, 504
                  %s2225 = smul.u32 %s2223, 504
                  %s2226 = scalar_lea.vmem %s1892, %s2224 [#allocation2]
                  %s2227 = scalar_lea.vmem %s1903, %s2225
                $region87: #{tpu_custom_call.1} parent=81 // loop_footer
                  %s2089 = sadd.s32 %s2087, 1
                $region88: #{tpu_custom_call.1} parent=81 // loop_footer_branch
                  %2086 = sbr.rel target = $region84
                $region89: #{tpu_custom_call.1} parent=81 // loop_exit
                  _
                %s2228 = sdiv.u32.pop %s1899, 63
                %s2229 = srem.u32.pop %s1899, 63
                %s2230 = smul.u32 %s2228, 63
                %s2231 = smul.u32 8, %s2230
                %s2232 = scalar_lea.vmem %s1892, %s2231 [#allocation2]
                %s2233 = smul.u32 8, %s2230
                %s2234 = scalar_lea.vmem %s1903, %s2233
                // While loop
                $region90: #{tpu_custom_call.1} parent=81 // loop_pre_header
                  _
                $region91: #{tpu_custom_call.1} parent=81 // loop_header
                  %s2236 = sphi 0, %s2238
                  %p2237 = scmp.ge.s32.totalorder %s2236, %s2229
                  %s2241 = sphi 0, %s2248
                  %s2242 = sphi %s2232, %s2251
                  %s2243 = sphi %s2234, %s2252
                $region92: #{tpu_custom_call.1} parent=81 // loop_header_branch
                  %2240 = sbr.rel (%p2237) target = $region96
                $region93: #{tpu_custom_call.1} parent=81 // loop_body
                  %v2244 = vld [vmem:[%s2242] sm:$0xff]
                  %2245 = vst [vmem:[%s2243] sm:$0xff] %v2244
                  %s2246 = sadd.s32 1, %s2241
                  %p2247 = scmp.ge.s32.totalorder %s2246, %s2229
                  %s2248 = scalar_select %p2247, 0, %s2246
                  %s2249 = smul.u32 %s2248, 8
                  %s2250 = smul.u32 %s2248, 8
                  %s2251 = scalar_lea.vmem %s2232, %s2249 [#allocation2]
                  %s2252 = scalar_lea.vmem %s2234, %s2250
                $region94: #{tpu_custom_call.1} parent=81 // loop_footer
                  %s2238 = sadd.s32 %s2236, 1
                $region95: #{tpu_custom_call.1} parent=81 // loop_footer_branch
                  %2235 = sbr.rel target = $region91
                $region96: #{tpu_custom_call.1} parent=81 // loop_exit
                  _
              $region82: #{tpu_custom_call.1} parent=59 // pred_fallthru
                _
              // Predicated region
              $region97: #{tpu_custom_call.1} parent=59 // pred_check
                _
              $region98: #{tpu_custom_call.1} parent=59 // pred_check_branch
                %2254 = sbr.rel target = $region100
              $region99: #{tpu_custom_call.1} parent=59 // pred_region
                _
              $region100: #{tpu_custom_call.1} parent=59 // pred_fallthru
                _
            $region60: #{tpu_custom_call.1} parent=55 // pred_fallthru
              _
            // Predicated region
            $region61: #{tpu_custom_call.1} parent=55 // pred_check
              _
            $region62: #{tpu_custom_call.1} parent=55 // pred_check_branch
              %1910 = sbr.rel target = $region64
            $region63: #{tpu_custom_call.1} parent=55 // pred_region
              %s1912 = ssub.s32 256, 1
              %s1913 = sdiv.u32.pop %s1899, 63
              %s1914 = srem.u32.pop %s1899, 63
              // While loop
              $region65: #{tpu_custom_call.1} parent=63 // loop_pre_header
                _
              $region66: #{tpu_custom_call.1} parent=63 // loop_header
                %s1916 = sphi 0, %s1918
                %p1917 = scmp.ge.s32.totalorder %s1916, %s1913
                %s1921 = sphi 0, %s2052
                %s1922 = sphi %s1892, %s2055
                %s1923 = sphi %s1903, %s2056
              $region67: #{tpu_custom_call.1} parent=63 // loop_header_branch
                %1920 = sbr.rel (%p1917) target = $region71
              $region68: #{tpu_custom_call.1} parent=63 // loop_body
                %v1924 = vld [vmem:[%s1922] sm:%s1912]
                %1925 = vst [vmem:[%s1923] sm:%s1912] %v1924
                %v1926 = vld [vmem:[%s1922 + $0x8] sm:%s1912]
                %1927 = vst [vmem:[%s1923 + $0x8] sm:%s1912] %v1926
                %v1928 = vld [vmem:[%s1922 + $0x10] sm:%s1912]
                %1929 = vst [vmem:[%s1923 + $0x10] sm:%s1912] %v1928
                %v1930 = vld [vmem:[%s1922 + $0x18] sm:%s1912]
                %1931 = vst [vmem:[%s1923 + $0x18] sm:%s1912] %v1930
                %v1932 = vld [vmem:[%s1922 + $0x20] sm:%s1912]
                %1933 = vst [vmem:[%s1923 + $0x20] sm:%s1912] %v1932
                %v1934 = vld [vmem:[%s1922 + $0x28] sm:%s1912]
                %1935 = vst [vmem:[%s1923 + $0x28] sm:%s1912] %v1934
                %v1936 = vld [vmem:[%s1922 + $0x30] sm:%s1912]
                %1937 = vst [vmem:[%s1923 + $0x30] sm:%s1912] %v1936
                %v1938 = vld [vmem:[%s1922 + $0x38] sm:%s1912]
                %1939 = vst [vmem:[%s1923 + $0x38] sm:%s1912] %v1938
                %v1940 = vld [vmem:[%s1922 + $0x40] sm:%s1912]
                %1941 = vst [vmem:[%s1923 + $0x40] sm:%s1912] %v1940
                %v1942 = vld [vmem:[%s1922 + $0x48] sm:%s1912]
                %1943 = vst [vmem:[%s1923 + $0x48] sm:%s1912] %v1942
                %v1944 = vld [vmem:[%s1922 + $0x50] sm:%s1912]
                %1945 = vst [vmem:[%s1923 + $0x50] sm:%s1912] %v1944
                %v1946 = vld [vmem:[%s1922 + $0x58] sm:%s1912]
                %1947 = vst [vmem:[%s1923 + $0x58] sm:%s1912] %v1946
                %v1948 = vld [vmem:[%s1922 + $0x60] sm:%s1912]
                %1949 = vst [vmem:[%s1923 + $0x60] sm:%s1912] %v1948
                %v1950 = vld [vmem:[%s1922 + $0x68] sm:%s1912]
                %1951 = vst [vmem:[%s1923 + $0x68] sm:%s1912] %v1950
                %v1952 = vld [vmem:[%s1922 + $0x70] sm:%s1912]
                %1953 = vst [vmem:[%s1923 + $0x70] sm:%s1912] %v1952
                %v1954 = vld [vmem:[%s1922 + $0x78] sm:%s1912]
                %1955 = vst [vmem:[%s1923 + $0x78] sm:%s1912] %v1954
                %v1956 = vld [vmem:[%s1922 + $0x80] sm:%s1912]
                %1957 = vst [vmem:[%s1923 + $0x80] sm:%s1912] %v1956
                %v1958 = vld [vmem:[%s1922 + $0x88] sm:%s1912]
                %1959 = vst [vmem:[%s1923 + $0x88] sm:%s1912] %v1958
                %v1960 = vld [vmem:[%s1922 + $0x90] sm:%s1912]
                %1961 = vst [vmem:[%s1923 + $0x90] sm:%s1912] %v1960
                %v1962 = vld [vmem:[%s1922 + $0x98] sm:%s1912]
                %1963 = vst [vmem:[%s1923 + $0x98] sm:%s1912] %v1962
                %v1964 = vld [vmem:[%s1922 + $0xa0] sm:%s1912]
                %1965 = vst [vmem:[%s1923 + $0xa0] sm:%s1912] %v1964
                %v1966 = vld [vmem:[%s1922 + $0xa8] sm:%s1912]
                %1967 = vst [vmem:[%s1923 + $0xa8] sm:%s1912] %v1966
                %v1968 = vld [vmem:[%s1922 + $0xb0] sm:%s1912]
                %1969 = vst [vmem:[%s1923 + $0xb0] sm:%s1912] %v1968
                %v1970 = vld [vmem:[%s1922 + $0xb8] sm:%s1912]
                %1971 = vst [vmem:[%s1923 + $0xb8] sm:%s1912] %v1970
                %v1972 = vld [vmem:[%s1922 + $0xc0] sm:%s1912]
                %1973 = vst [vmem:[%s1923 + $0xc0] sm:%s1912] %v1972
                %v1974 = vld [vmem:[%s1922 + $0xc8] sm:%s1912]
                %1975 = vst [vmem:[%s1923 + $0xc8] sm:%s1912] %v1974
                %v1976 = vld [vmem:[%s1922 + $0xd0] sm:%s1912]
                %1977 = vst [vmem:[%s1923 + $0xd0] sm:%s1912] %v1976
                %v1978 = vld [vmem:[%s1922 + $0xd8] sm:%s1912]
                %1979 = vst [vmem:[%s1923 + $0xd8] sm:%s1912] %v1978
                %v1980 = vld [vmem:[%s1922 + $0xe0] sm:%s1912]
                %1981 = vst [vmem:[%s1923 + $0xe0] sm:%s1912] %v1980
                %v1982 = vld [vmem:[%s1922 + $0xe8] sm:%s1912]
                %1983 = vst [vmem:[%s1923 + $0xe8] sm:%s1912] %v1982
                %v1984 = vld [vmem:[%s1922 + $0xf0] sm:%s1912]
                %1985 = vst [vmem:[%s1923 + $0xf0] sm:%s1912] %v1984
                %v1986 = vld [vmem:[%s1922 + $0xf8] sm:%s1912]
                %1987 = vst [vmem:[%s1923 + $0xf8] sm:%s1912] %v1986
                %v1988 = vld [vmem:[%s1922 + $0x100] sm:%s1912]
                %1989 = vst [vmem:[%s1923 + $0x100] sm:%s1912] %v1988
                %v1990 = vld [vmem:[%s1922 + $0x108] sm:%s1912]
                %1991 = vst [vmem:[%s1923 + $0x108] sm:%s1912] %v1990
                %v1992 = vld [vmem:[%s1922 + $0x110] sm:%s1912]
                %1993 = vst [vmem:[%s1923 + $0x110] sm:%s1912] %v1992
                %v1994 = vld [vmem:[%s1922 + $0x118] sm:%s1912]
                %1995 = vst [vmem:[%s1923 + $0x118] sm:%s1912] %v1994
                %v1996 = vld [vmem:[%s1922 + $0x120] sm:%s1912]
                %1997 = vst [vmem:[%s1923 + $0x120] sm:%s1912] %v1996
                %v1998 = vld [vmem:[%s1922 + $0x128] sm:%s1912]
                %1999 = vst [vmem:[%s1923 + $0x128] sm:%s1912] %v1998
                %v2000 = vld [vmem:[%s1922 + $0x130] sm:%s1912]
                %2001 = vst [vmem:[%s1923 + $0x130] sm:%s1912] %v2000
                %v2002 = vld [vmem:[%s1922 + $0x138] sm:%s1912]
                %2003 = vst [vmem:[%s1923 + $0x138] sm:%s1912] %v2002
                %v2004 = vld [vmem:[%s1922 + $0x140] sm:%s1912]
                %2005 = vst [vmem:[%s1923 + $0x140] sm:%s1912] %v2004
                %v2006 = vld [vmem:[%s1922 + $0x148] sm:%s1912]
                %2007 = vst [vmem:[%s1923 + $0x148] sm:%s1912] %v2006
                %v2008 = vld [vmem:[%s1922 + $0x150] sm:%s1912]
                %2009 = vst [vmem:[%s1923 + $0x150] sm:%s1912] %v2008
                %v2010 = vld [vmem:[%s1922 + $0x158] sm:%s1912]
                %2011 = vst [vmem:[%s1923 + $0x158] sm:%s1912] %v2010
                %v2012 = vld [vmem:[%s1922 + $0x160] sm:%s1912]
                %2013 = vst [vmem:[%s1923 + $0x160] sm:%s1912] %v2012
                %v2014 = vld [vmem:[%s1922 + $0x168] sm:%s1912]
                %2015 = vst [vmem:[%s1923 + $0x168] sm:%s1912] %v2014
                %v2016 = vld [vmem:[%s1922 + $0x170] sm:%s1912]
                %2017 = vst [vmem:[%s1923 + $0x170] sm:%s1912] %v2016
                %v2018 = vld [vmem:[%s1922 + $0x178] sm:%s1912]
                %2019 = vst [vmem:[%s1923 + $0x178] sm:%s1912] %v2018
                %v2020 = vld [vmem:[%s1922 + $0x180] sm:%s1912]
                %2021 = vst [vmem:[%s1923 + $0x180] sm:%s1912] %v2020
                %v2022 = vld [vmem:[%s1922 + $0x188] sm:%s1912]
                %2023 = vst [vmem:[%s1923 + $0x188] sm:%s1912] %v2022
                %v2024 = vld [vmem:[%s1922 + $0x190] sm:%s1912]
                %2025 = vst [vmem:[%s1923 + $0x190] sm:%s1912] %v2024
                %v2026 = vld [vmem:[%s1922 + $0x198] sm:%s1912]
                %2027 = vst [vmem:[%s1923 + $0x198] sm:%s1912] %v2026
                %v2028 = vld [vmem:[%s1922 + $0x1a0] sm:%s1912]
                %2029 = vst [vmem:[%s1923 + $0x1a0] sm:%s1912] %v2028
                %v2030 = vld [vmem:[%s1922 + $0x1a8] sm:%s1912]
                %2031 = vst [vmem:[%s1923 + $0x1a8] sm:%s1912] %v2030
                %v2032 = vld [vmem:[%s1922 + $0x1b0] sm:%s1912]
                %2033 = vst [vmem:[%s1923 + $0x1b0] sm:%s1912] %v2032
                %v2034 = vld [vmem:[%s1922 + $0x1b8] sm:%s1912]
                %2035 = vst [vmem:[%s1923 + $0x1b8] sm:%s1912] %v2034
                %v2036 = vld [vmem:[%s1922 + $0x1c0] sm:%s1912]
                %2037 = vst [vmem:[%s1923 + $0x1c0] sm:%s1912] %v2036
                %v2038 = vld [vmem:[%s1922 + $0x1c8] sm:%s1912]
                %2039 = vst [vmem:[%s1923 + $0x1c8] sm:%s1912] %v2038
                %v2040 = vld [vmem:[%s1922 + $0x1d0] sm:%s1912]
                %2041 = vst [vmem:[%s1923 + $0x1d0] sm:%s1912] %v2040
                %v2042 = vld [vmem:[%s1922 + $0x1d8] sm:%s1912]
                %2043 = vst [vmem:[%s1923 + $0x1d8] sm:%s1912] %v2042
                %v2044 = vld [vmem:[%s1922 + $0x1e0] sm:%s1912]
                %2045 = vst [vmem:[%s1923 + $0x1e0] sm:%s1912] %v2044
                %v2046 = vld [vmem:[%s1922 + $0x1e8] sm:%s1912]
                %2047 = vst [vmem:[%s1923 + $0x1e8] sm:%s1912] %v2046
                %v2048 = vld [vmem:[%s1922 + $0x1f0] sm:%s1912]
                %2049 = vst [vmem:[%s1923 + $0x1f0] sm:%s1912] %v2048
                %s2050 = sadd.s32 1, %s1921
                %p2051 = scmp.ge.s32.totalorder %s2050, %s1913
                %s2052 = scalar_select %p2051, 0, %s2050
                %s2053 = smul.u32 %s2052, 504
                %s2054 = smul.u32 %s2052, 504
                %s2055 = scalar_lea.vmem %s1892, %s2053 [#allocation2]
                %s2056 = scalar_lea.vmem %s1903, %s2054
              $region69: #{tpu_custom_call.1} parent=63 // loop_footer
                %s1918 = sadd.s32 %s1916, 1
              $region70: #{tpu_custom_call.1} parent=63 // loop_footer_branch
                %1915 = sbr.rel target = $region66
              $region71: #{tpu_custom_call.1} parent=63 // loop_exit
                _
              %s2057 = sdiv.u32.pop %s1899, 63
              %s2058 = srem.u32.pop %s1899, 63
              %s2059 = smul.u32 %s2057, 63
              %s2060 = smul.u32 8, %s2059
              %s2061 = scalar_lea.vmem %s1892, %s2060 [#allocation2]
              %s2062 = smul.u32 8, %s2059
              %s2063 = scalar_lea.vmem %s1903, %s2062
              // While loop
              $region72: #{tpu_custom_call.1} parent=63 // loop_pre_header
                _
              $region73: #{tpu_custom_call.1} parent=63 // loop_header
                %s2065 = sphi 0, %s2067
                %p2066 = scmp.ge.s32.totalorder %s2065, %s2058
                %s2070 = sphi 0, %s2077
                %s2071 = sphi %s2061, %s2080
                %s2072 = sphi %s2063, %s2081
              $region74: #{tpu_custom_call.1} parent=63 // loop_header_branch
                %2069 = sbr.rel (%p2066) target = $region78
              $region75: #{tpu_custom_call.1} parent=63 // loop_body
                %v2073 = vld [vmem:[%s2071] sm:%s1912]
                %2074 = vst [vmem:[%s2072] sm:%s1912] %v2073
                %s2075 = sadd.s32 1, %s2070
                %p2076 = scmp.ge.s32.totalorder %s2075, %s2058
                %s2077 = scalar_select %p2076, 0, %s2075
                %s2078 = smul.u32 %s2077, 8
                %s2079 = smul.u32 %s2077, 8
                %s2080 = scalar_lea.vmem %s2061, %s2078 [#allocation2]
                %s2081 = scalar_lea.vmem %s2063, %s2079
              $region76: #{tpu_custom_call.1} parent=63 // loop_footer
                %s2067 = sadd.s32 %s2065, 1
              $region77: #{tpu_custom_call.1} parent=63 // loop_footer_branch
                %2064 = sbr.rel target = $region73
              $region78: #{tpu_custom_call.1} parent=63 // loop_exit
                _
            $region64: #{tpu_custom_call.1} parent=55 // pred_fallthru
              _
          $region56: #{tpu_custom_call.1} parent=51 // pred_fallthru
            _
          %2255 = vnop
        $region52: #{tpu_custom_call.1} parent=47 // pred_fallthru
          _
      $region48: #{tpu_custom_call.1} parent=5 // pred_fallthru
        _
      %p2256 = scmp.le.s32.totalorder 2, %s13
      // Predicated region
      $region101: #{tpu_custom_call.1} parent=5 // pred_check
        %p2257 = pneg %p2256
      $region102: #{tpu_custom_call.1} parent=5 // pred_check_branch
        %2259 = sbr.rel (%p2257) target = $region104
      $region103: #{tpu_custom_call.1} parent=5 // pred_region
        %s2260 = ssub.s32 %s13, 2
        // Predicated region
        $region105: #{tpu_custom_call.1} parent=103 // pred_check
          %p2261 = pneg %p194
        $region106: #{tpu_custom_call.1} parent=103 // pred_check_branch
          %2263 = sbr.rel (%p2261) target = $region108
        $region107: #{tpu_custom_call.1} parent=103 // pred_region
          %s2264 = sand.u32 %s179, 1
          %s2265 = sand.u32 %s179, 1
          %s2266 = smul.addr %s2265, 504
          %s2267 = scalar_lea.vmem [#allocation2], %s2266
        $region108: #{tpu_custom_call.1} parent=103 // pred_fallthru
          _
      $region104: #{tpu_custom_call.1} parent=5 // pred_fallthru
        _
    $region6: #{tpu_custom_call.1} parent=1 // loop_footer
      %s17 = sadd.s32 1, %s13
    $region7: #{tpu_custom_call.1} parent=1 // loop_footer_branch
      %12 = sbr.rel target = $region3
    $region8: #{tpu_custom_call.1} parent=1 // loop_exit
      _

</llo_original>
